<compile_context>
chip_gen: v6e
topology: v6e:2x2x1
jax: 0.10.0
libtpu: 0.0.40
codegen_flags: <defaults>
</compile_context>

<pallas_src>
import functools
import math

import jax
import jax.numpy as jnp
from jax.experimental import pallas as pl
from jax.experimental.pallas import tpu as pltpu

BN_EPS = 1e-5


# ----------------------------- small helpers --------------------------------
def _round_up(x, m):
    return ((x + m - 1) // m) * m


def _pick_tile_m(m_img, width, target=2048):
    """Largest tile (multiple of both `width` and 128, dividing H*W) <= target."""
    lcm = width * 128 // math.gcd(width, 128)
    if m_img % lcm != 0 or m_img <= lcm:
        return m_img
    tm = lcm
    while tm * 2 <= min(m_img, target) and m_img % (tm * 2) == 0:
        tm *= 2
    return tm


def _vmem_limit(needed_bytes):
    cap = 64 << 20
    try:
        info = pltpu.get_tpu_info()
        cap = int(getattr(info, "vmem_capacity_bytes", cap))
    except Exception:
        pass
    budget = max((cap * 3) // 4, 16 << 20)          # never below 16 MiB
    return int(min(budget, max(needed_bytes + (4 << 20), 16 << 20)))


# ------------------------------ Pallas kernels -------------------------------
def _conv_bn_stats_kernel(x_ref, w_ref, ss_ref, y_ref, stat_ref,
                          xp_ref, win_ref, col_ref, *,
                          width, pad, fuse_input_bn_relu):
    """One row tile of one image:
       [optional fused BN+ReLU of the input, applied while parking the image]
       -> 3x3 conv as one fat MXU matmul -> raw conv tile + BN partials.

    x_ref   : (Cin, M)          whole flattened image (pipelined block)
    w_ref   : (Cout, 9*Cin)     bf16 weight, column = (kh*3+kw)*Cin + cin
    ss_ref  : (Cin, 2)          folded (scale, shift) of the previous BN
    y_ref   : (Cout, TM)        raw (pre-BN) conv output tile, bf16
    stat_ref: (Cout, 2)         per-tile [sum, centered sum-of-squares], f32
    xp_ref  : (Cin, M+2*pad)    bf16 scratch: whole image with zero halo lanes
    win_ref : (Cin, TM+2*pad)   bf16 scratch: current tile + halo
    col_ref : (9*Cin, TM)       bf16 scratch: im2col tile
    """
    cin, m_img = x_ref.shape
    cout, tile_m = y_ref.shape
    r = pl.program_id(1)

    # --- once per image: park (BN+ReLU'ed) bf16 image in the padded scratch.
    #     r is the innermost "arbitrary" axis, so r==0 always runs first for
    #     each image on whichever TensorCore owns it (scratch is per-core).
    @pl.when(r == 0)
    def _fill_image():
        x = x_ref[...].astype(jnp.float32)
        if fuse_input_bn_relu:
            x = jnp.maximum(x * ss_ref[:, 0:1] + ss_ref[:, 1:2], 0.0)
        xp_ref[:, 0:pad] = jnp.zeros((cin, pad), dtype=xp_ref.dtype)
        xp_ref[:, pad:pad + m_img] = x.astype(xp_ref.dtype)
        xp_ref[:, pad + m_img:pad + m_img + pad] = jnp.zeros(
            (cin, pad), dtype=xp_ref.dtype)

    # --- tile window: current tile plus `pad` halo lanes on each side,
    #     loaded with a lane-ALIGNED dynamic start.
    base = r * tile_m
    if tile_m % 128 == 0:
        base = pl.multiple_of(base, 128)
    win_ref[...] = xp_ref[:, pl.ds(base, win_ref.shape[1])]

    # --- column-boundary masks (row boundaries are handled by the zero halo).
    m_idx = jax.lax.broadcasted_iota(jnp.int32, (1, tile_m), 1)
    w_idx = m_idx % width
    not_first_col = w_idx > 0            # valid positions for dw = -1
    not_last_col = w_idx < (width - 1)   # valid positions for dw = +1
    zeros_tap = jnp.zeros((cin, tile_m), dtype=col_ref.dtype)

    # --- im2col: 9 full-lane row-block writes into the bf16 col scratch.
    k = 0
    for dh in (-1, 0, 1):
        for dw in (-1, 0, 1):
            off = pad + dh * width + dw              # static in-window offset
            v = win_ref[:, off:off + tile_m]
            if dw == -1:
                v = jnp.where(not_first_col, v, zeros_tap)
            elif dw == 1:
                v = jnp.where(not_last_col, v, zeros_tap)
            col_ref[k * cin:(k + 1) * cin, :] = v
            k += 1

    # --- one fat MXU matmul, f32 accumulation, lane-dense (Cout, TM) store.
    #     (Conv bias intentionally omitted: cancelled by training-mode BN.)
    y = jnp.dot(w_ref[...], col_ref[...], preferred_element_type=jnp.float32)
    y_ref[...] = y.astype(y_ref.dtype)

    # --- per-tile BN partials (f32): sum and centered sum of squares.
    s1 = jnp.sum(y, axis=1, keepdims=True)             # (Cout, 1)
    d = y - s1 * (1.0 / tile_m)
    m2 = jnp.sum(d * d, axis=1, keepdims=True)
    stat_ref[...] = jnp.concatenate([s1, m2], axis=1)  # (Cout, 2)


def _bn_relu_kernel(y_ref, ss_ref, o_ref):
    """Final elementwise pass: out = relu(y * scale + shift), lane-dense."""
    y = y_ref[...].astype(jnp.float32)
    o_ref[...] = jnp.maximum(y * ss_ref[:, 0:1] + ss_ref[:, 1:2], 0.0)


# --------------------------- pallas_call wrappers -----------------------------
def _conv_stage(x_flat, w_mat, ss_in, *, width, tile_m, fuse_input_bn_relu):
    """x_flat: (N, Cin, M).  Returns (y_raw bf16 (N,Cout,M), stats (N,HT,Cout,2))."""
    n, cin, m_img = x_flat.shape
    cout = w_mat.shape[0]
    assert m_img % tile_m == 0 and tile_m % width == 0
    ht = m_img // tile_m
    pad = _round_up(width + 1, 128)
    wlen = tile_m + 2 * pad

    in_bytes = x_flat.dtype.itemsize
    needed = (2 * cin * m_img * in_bytes           # input block, double buffer
              + 2 * cout * 9 * cin * 2             # weights
              + 2 * cin * 2 * 4                    # scale/shift
              + 2 * cout * tile_m * 2              # output tile, double buffer
              + 2 * cout * 2 * 4                   # stats
              + cin * (m_img + 2 * pad) * 2        # padded image scratch
              + cin * wlen * 2                     # window scratch
              + 9 * cin * tile_m * 2)              # im2col scratch

    cost = pl.CostEstimate(
        flops=2 * n * m_img * 9 * cin * cout,
        transcendentals=0,
        bytes_accessed=int(x_flat.size * in_bytes + w_mat.size * 2
                           + ss_in.size * 4 + n * cout * m_img * 2
                           + n * ht * cout * 2 * 4))

    kern = functools.partial(_conv_bn_stats_kernel, width=width, pad=pad,
                             fuse_input_bn_relu=fuse_input_bn_relu)

    y, stats = pl.pallas_call(
        kern,
        grid=(n, ht),
        in_specs=[
            pl.BlockSpec((None, cin, m_img), lambda i, r: (i, 0, 0)),
            pl.BlockSpec((cout, 9 * cin), lambda i, r: (0, 0)),
            pl.BlockSpec((cin, 2), lambda i, r: (0, 0)),
        ],
        out_specs=(
            pl.BlockSpec((None, cout, tile_m), lambda i, r: (i, 0, r)),
            pl.BlockSpec((None, None, cout, 2), lambda i, r: (i, r, 0, 0)),
        ),
        out_shape=(
            jax.ShapeDtypeStruct((n, cout, m_img), jnp.bfloat16),
            jax.ShapeDtypeStruct((n, ht, cout, 2), jnp.float32),
        ),
        scratch_shapes=[
            pltpu.VMEM((cin, m_img + 2 * pad), jnp.bfloat16),  # padded image
            pltpu.VMEM((cin, wlen), jnp.bfloat16),             # tile window
            pltpu.VMEM((9 * cin, tile_m), jnp.bfloat16),       # im2col tile
        ],
        # r must stay "arbitrary": the padded-image scratch is filled at r==0.
        compiler_params=pltpu.CompilerParams(
            dimension_semantics=("parallel", "arbitrary"),
            vmem_limit_bytes=_vmem_limit(needed)),
        cost_estimate=cost,
    )(x_flat, w_mat, ss_in)
    return y, stats


def _bn_relu(y_flat, ss, *, tile_m):
    n, c, m_img = y_flat.shape
    mt = m_img // tile_m
    needed = 2 * c * tile_m * (2 + 4) + c * 2 * 4
    return pl.pallas_call(
        _bn_relu_kernel,
        grid=(n, mt),
        in_specs=[
            pl.BlockSpec((None, c, tile_m), lambda i, t: (i, 0, t)),
            pl.BlockSpec((c, 2), lambda i, t: (0, 0)),
        ],
        out_specs=pl.BlockSpec((None, c, tile_m), lambda i, t: (i, 0, t)),
        out_shape=jax.ShapeDtypeStruct((n, c, m_img), jnp.float32),
        compiler_params=pltpu.CompilerParams(
            dimension_semantics=("parallel", "parallel"),
            vmem_limit_bytes=_vmem_limit(needed)),
    )(y_flat, ss)


# --------------------------- parameter / glue helpers -------------------------
def _oihw_to_mat(w_oihw):
    """PyTorch (O, I, 3, 3) -> (O, 9*I) with column index (kh*3 + kw)*I + i."""
    o, i = w_oihw.shape[0], w_oihw.shape[1]
    return jnp.transpose(w_oihw, (0, 2, 3, 1)).reshape(o, 9 * i)


def _finalize_bn(stats, gamma, beta, tile_m, n_total):
    """Global training-mode BN from per-tile partials via the Chan/Welford
    merge; returns per-channel (scale, shift) as a (C, 2) array."""
    s = stats[..., 0].astype(jnp.float32)     # (N, HT, C) per-tile sums
    m2 = stats[..., 1].astype(jnp.float32)    # (N, HT, C) per-tile centered SS
    mean = jnp.sum(s, axis=(0, 1)) / n_total                      # (C,)
    mu_b = s / tile_m
    m2_tot = (jnp.sum(m2, axis=(0, 1))
              + tile_m * jnp.sum((mu_b - mean) ** 2, axis=(0, 1)))
    var = jnp.maximum(m2_tot / n_total, 0.0)                      # biased var
    scale = gamma * jax.lax.rsqrt(var + BN_EPS)
    shift = beta - mean * scale
    return jnp.stack([scale, shift], axis=1)                      # (C, 2)


def init_double_conv_params(key, in_ch, out_ch):
    """Synthetic parameters matching nn.Conv2d / nn.BatchNorm2d shapes."""
    k1, k2, k3, k4 = jax.random.split(key, 4)
    w1 = jax.random.normal(k1, (out_ch, in_ch, 3, 3), jnp.float32) * 0.1
    b1 = jax.random.normal(k2, (out_ch,), jnp.float32) * 0.1
    w2 = jax.random.normal(k3, (out_ch, out_ch, 3, 3), jnp.float32) * 0.1
    b2 = jax.random.normal(k4, (out_ch,), jnp.float32) * 0.1
    g1 = jnp.ones((out_ch,), jnp.float32)
    be1 = jnp.zeros((out_ch,), jnp.float32)
    g2 = jnp.ones((out_ch,), jnp.float32)
    be2 = jnp.zeros((out_ch,), jnp.float32)
    return dict(w1=w1, b1=b1, g1=g1, be1=be1, w2=w2, b2=b2, g2=g2, be2=be2)


@functools.partial(jax.jit, static_argnames=("tile_m",))
def double_conv(x_nchw, params, *, tile_m=None):
    """Forward pass of DoubleConv. Input/output are NCHW like PyTorch."""
    n, cin, h, w = x_nchw.shape
    m_img = h * w
    if tile_m is None:
        tile_m = _pick_tile_m(m_img, w)

    x_flat = x_nchw.reshape(n, cin, m_img)                     # NCHW-flat
    w1 = _oihw_to_mat(params["w1"]).astype(jnp.bfloat16)       # (cout, 9*cin)
    w2 = _oihw_to_mat(params["w2"]).astype(jnp.bfloat16)       # (cout, 9*cout)
    cout = w1.shape[0]

    # conv1 (no input BN/ReLU; conv bias dropped -- cancelled by training BN)
    ss_id = jnp.stack([jnp.ones((cin,), jnp.float32),
                       jnp.zeros((cin,), jnp.float32)], axis=1)
    y1, st1 = _conv_stage(x_flat, w1, ss_id, width=w, tile_m=tile_m,
                          fuse_input_bn_relu=False)
    ss1 = _finalize_bn(st1, params["g1"], params["be1"], tile_m, n * m_img)

    # conv2 with BN1 + ReLU fused into its image-load path
    y2, st2 = _conv_stage(y1, w2, ss1, width=w, tile_m=tile_m,
                          fuse_input_bn_relu=True)
    ss2 = _finalize_bn(st2, params["g2"], params["be2"], tile_m, n * m_img)

    out = _bn_relu(y2, ss2, tile_m=tile_m)                     # BN2 + ReLU, f32
    return out.reshape(n, cout, h, w)


# ---------------- pure-JAX reference (for correctness check) -----------------
def _ref_conv_bn_relu(x_nchw, w, b, g, be):
    y = jax.lax.conv_general_dilated(
        x_nchw, w, window_strides=(1, 1), padding=((1, 1), (1, 1)),
        dimension_numbers=("NCHW", "OIHW", "NCHW"))
    y = y + b[None, :, None, None]
    mean = jnp.mean(y, axis=(0, 2, 3), keepdims=True)
    var = jnp.mean(jnp.square(y - mean), axis=(0, 2, 3), keepdims=True)
    y = (y - mean) * jax.lax.rsqrt(var + BN_EPS)
    y = y * g[None, :, None, None] + be[None, :, None, None]
    return jnp.maximum(y, 0.0)


def double_conv_ref(x_nchw, p):
    y = _ref_conv_bn_relu(x_nchw, p["w1"], p["b1"], p["g1"], p["be1"])
    y = _ref_conv_bn_relu(y, p["w2"], p["b2"], p["g2"], p["be2"])
    return y


if __name__ == "__main__":
    key = jax.random.PRNGKey(0)
    kx, kp = jax.random.split(key)

    N, in_ch, out_ch, H, W = 2, 4, 8, 16, 16
    x = jax.random.normal(kx, (N, in_ch, H, W), jnp.float32)
    params = init_double_conv_params(kp, in_ch, out_ch)

    # tile_m=128 -> 2 row tiles per image: exercises the halo / multi-tile path.
    out = jax.block_until_ready(double_conv(x, params, tile_m=128))
    assert out.shape == (N, out_ch, H, W), out.shape

    ref = jax.block_until_ready(double_conv_ref(x, params))
    max_err = float(jnp.max(jnp.abs(out - ref)))
    # bf16 MXU operands + bf16 intermediate storage vs an all-f32 reference;
    # outputs are O(1) after BatchNorm, observed error is ~1e-2.
    if not jnp.allclose(out, ref, atol=5e-2, rtol=5e-2):
        raise AssertionError(
            f"Pallas DoubleConv mismatch vs reference (max abs err {max_err})")

    print("KERNEL_OK")
</pallas_src>

<mosaic_0001>
module attributes {stable_mosaic.version = 11 : i64} {
  func.func @_conv_bn_stats_kernel(%arg0: i32, %arg1: i32, %arg2: memref<1x4x256xf32, #tpu.memory_space<vmem>>, %arg3: memref<8x36xbf16, #tpu.memory_space<vmem>>, %arg4: memref<4x2xf32, #tpu.memory_space<vmem>>, %arg5: memref<1x8x128xbf16, #tpu.memory_space<vmem>>, %arg6: memref<1x1x8x2xf32, #tpu.memory_space<vmem>>, %arg7: memref<4x512xbf16, #tpu.memory_space<vmem>>, %arg8: memref<4x384xbf16, #tpu.memory_space<vmem>>, %arg9: memref<36x128xbf16, #tpu.memory_space<vmem>>) attributes {dimension_semantics = [#tpu.dimension_semantics<parallel>, #tpu.dimension_semantics<arbitrary>], iteration_bounds = array<i64: 2, 2>, scalar_prefetch = 0 : i64, scratch_operands = 3 : i64, tpu.core_type = #tpu.core_type<tc>, window_params = [{transform_indices = @transform_0, window_bounds = array<i64: 1, 4, 256>}, {pipeline_mode = #tpu.pipeline_mode<synchronous>, transform_indices = @transform_1, window_bounds = array<i64: 8, 36>}, {pipeline_mode = #tpu.pipeline_mode<synchronous>, transform_indices = @transform_2, window_bounds = array<i64: 4, 2>}, {transform_indices = @transform_3, window_bounds = array<i64: 1, 8, 128>}, {transform_indices = @transform_4, window_bounds = array<i64: 1, 1, 8, 2>}]} {
    %c0_i32 = arith.constant 0 : i32
    %0 = arith.cmpi eq, %arg1, %c0_i32 : i32
    %1 = arith.extui %0 : i1 to i32
    %c0_i32_0 = arith.constant 0 : i32
    %2 = arith.cmpi ne, %1, %c0_i32_0 : i32
    scf.if %2 {
      %c0_42 = arith.constant 0 : index
      %c0_43 = arith.constant 0 : index
      %c0_44 = arith.constant 0 : index
      %86 = vector.load %arg2[%c0_42, %c0_43, %c0_44] : memref<1x4x256xf32, #tpu.memory_space<vmem>>, vector<1x4x256xf32>
      %87 = vector.shape_cast %86 : vector<1x4x256xf32> to vector<4x256xf32>
      %cst_45 = arith.constant 0.000000e+00 : bf16
      %88 = vector.broadcast %cst_45 : bf16 to vector<4x128xbf16>
      %c0_46 = arith.constant 0 : index
      %c0_47 = arith.constant 0 : index
      %89 = vector.load %arg7[%c0_46, %c0_47] : memref<4x512xbf16, #tpu.memory_space<vmem>>, vector<4x128xbf16>
      tpu.vector_store %arg7[%c0_46, %c0_47], %88 {strides = array<i32>} : memref<4x512xbf16, #tpu.memory_space<vmem>>, vector<4x128xbf16>,
      %90 = arith.truncf %87 : vector<4x256xf32> to vector<4x256xbf16>
      %c0_48 = arith.constant 0 : index
      %c128_49 = arith.constant 128 : index
      %91 = vector.load %arg7[%c0_48, %c128_49] : memref<4x512xbf16, #tpu.memory_space<vmem>>, vector<4x256xbf16>
      tpu.vector_store %arg7[%c0_48, %c128_49], %90 {strides = array<i32>} : memref<4x512xbf16, #tpu.memory_space<vmem>>, vector<4x256xbf16>,
      %cst_50 = arith.constant 0.000000e+00 : bf16
      %92 = vector.broadcast %cst_50 : bf16 to vector<4x128xbf16>
      %c0_51 = arith.constant 0 : index
      %c384 = arith.constant 384 : index
      %93 = vector.load %arg7[%c0_51, %c384] : memref<4x512xbf16, #tpu.memory_space<vmem>>, vector<4x128xbf16>
      tpu.vector_store %arg7[%c0_51, %c384], %92 {strides = array<i32>} : memref<4x512xbf16, #tpu.memory_space<vmem>>, vector<4x128xbf16>,
    } else {
    }
    %c128_i32 = arith.constant 128 : i32
    %3 = arith.muli %arg1, %c128_i32 : i32
    %4 = tpu.assume_multiple %3, 128 : i32
    %c0 = arith.constant 0 : index
    %5 = arith.index_cast %4 : i32 to index
    %6 = vector.load %arg7[%c0, %5] : memref<4x512xbf16, #tpu.memory_space<vmem>>, vector<4x384xbf16>
    %c0_1 = arith.constant 0 : index
    %c0_2 = arith.constant 0 : index
    %7 = vector.load %arg8[%c0_1, %c0_2] : memref<4x384xbf16, #tpu.memory_space<vmem>>, vector<4x384xbf16>
    tpu.vector_store %arg8[%c0_1, %c0_2], %6 {strides = array<i32>} : memref<4x384xbf16, #tpu.memory_space<vmem>>, vector<4x384xbf16>,
    %8 = tpu.iota {dimensions = array<i32: 1>} : vector<1x128xi32>
    %c16_i32 = arith.constant 16 : i32
    %c0_i32_3 = arith.constant 0 : i32
    %9 = arith.cmpi eq, %c16_i32, %c0_i32_3 : i32
    %c1_i32 = arith.constant 1 : i32
    %10 = arith.select %9, %c1_i32, %c16_i32 : i32
    %11 = vector.broadcast %10 : i32 to vector<1x128xi32>
    %12 = arith.remsi %8, %11 : vector<1x128xi32>
    %c0_i32_4 = arith.constant 0 : i32
    %13 = vector.broadcast %c0_i32_4 : i32 to vector<1x128xi32>
    %14 = arith.cmpi ne, %12, %13 : vector<1x128xi32>
    %c0_i32_5 = arith.constant 0 : i32
    %15 = vector.broadcast %c0_i32_5 : i32 to vector<1x128xi32>
    %16 = arith.cmpi slt, %12, %15 : vector<1x128xi32>
    %c0_i32_6 = arith.constant 0 : i32
    %17 = arith.cmpi slt, %10, %c0_i32_6 : i32
    %18 = vector.broadcast %17 : i1 to vector<1x128xi1>
    %19 = vector.broadcast %18 : vector<1x128xi1> to vector<1x128xi1>
    %20 = arith.xori %16, %19 : vector<1x128xi1>
    %21 = arith.andi %20, %14 : vector<1x128xi1>
    %22 = vector.broadcast %10 : i32 to vector<1x128xi32>
    %23 = arith.addi %12, %22 : vector<1x128xi32>
    %24 = arith.select %21, %23, %12 : vector<1x128xi1>, vector<1x128xi32>
    %c0_i32_7 = arith.constant 0 : i32
    %25 = vector.broadcast %c0_i32_7 : i32 to vector<1x128xi32>
    %26 = arith.cmpi sgt, %24, %25 : vector<1x128xi32>
    %c15_i32 = arith.constant 15 : i32
    %27 = vector.broadcast %c15_i32 : i32 to vector<1x128xi32>
    %28 = arith.cmpi slt, %24, %27 : vector<1x128xi32>
    %cst = arith.constant 0.000000e+00 : bf16
    %29 = vector.broadcast %cst : bf16 to vector<4x128xbf16>
    %c0_8 = arith.constant 0 : index
    %c111 = arith.constant 111 : index
    %30 = vector.load %arg8[%c0_8, %c111] : memref<4x384xbf16, #tpu.memory_space<vmem>>, vector<4x128xbf16>
    %31 = vector.shape_cast %26 : vector<1x128xi1> to vector<1x128xi1>
    %32 = vector.broadcast %31 : vector<1x128xi1> to vector<4x128xi1>
    %33 = arith.select %32, %30, %29 : vector<4x128xi1>, vector<4x128xbf16>
    %c0_9 = arith.constant 0 : index
    %c0_10 = arith.constant 0 : index
    %34 = vector.load %arg9[%c0_9, %c0_10] : memref<36x128xbf16, #tpu.memory_space<vmem>>, vector<4x128xbf16>
    tpu.vector_store %arg9[%c0_9, %c0_10], %33 {strides = array<i32>} : memref<36x128xbf16, #tpu.memory_space<vmem>>, vector<4x128xbf16>,
    %c0_11 = arith.constant 0 : index
    %c112 = arith.constant 112 : index
    %35 = vector.load %arg8[%c0_11, %c112] : memref<4x384xbf16, #tpu.memory_space<vmem>>, vector<4x128xbf16>
    %c4 = arith.constant 4 : index
    %c0_12 = arith.constant 0 : index
    %36 = vector.load %arg9[%c4, %c0_12] : memref<36x128xbf16, #tpu.memory_space<vmem>>, vector<4x128xbf16>
    tpu.vector_store %arg9[%c4, %c0_12], %35 {strides = array<i32>} : memref<36x128xbf16, #tpu.memory_space<vmem>>, vector<4x128xbf16>,
    %c0_13 = arith.constant 0 : index
    %c113 = arith.constant 113 : index
    %37 = vector.load %arg8[%c0_13, %c113] : memref<4x384xbf16, #tpu.memory_space<vmem>>, vector<4x128xbf16>
    %38 = vector.shape_cast %28 : vector<1x128xi1> to vector<1x128xi1>
    %39 = vector.broadcast %38 : vector<1x128xi1> to vector<4x128xi1>
    %40 = arith.select %39, %37, %29 : vector<4x128xi1>, vector<4x128xbf16>
    %c8 = arith.constant 8 : index
    %c0_14 = arith.constant 0 : index
    %41 = vector.load %arg9[%c8, %c0_14] : memref<36x128xbf16, #tpu.memory_space<vmem>>, vector<4x128xbf16>
    tpu.vector_store %arg9[%c8, %c0_14], %40 {strides = array<i32>} : memref<36x128xbf16, #tpu.memory_space<vmem>>, vector<4x128xbf16>,
    %c0_15 = arith.constant 0 : index
    %c127 = arith.constant 127 : index
    %42 = vector.load %arg8[%c0_15, %c127] : memref<4x384xbf16, #tpu.memory_space<vmem>>, vector<4x128xbf16>
    %43 = vector.shape_cast %26 : vector<1x128xi1> to vector<1x128xi1>
    %44 = vector.broadcast %43 : vector<1x128xi1> to vector<4x128xi1>
    %45 = arith.select %44, %42, %29 : vector<4x128xi1>, vector<4x128xbf16>
    %c12 = arith.constant 12 : index
    %c0_16 = arith.constant 0 : index
    %46 = vector.load %arg9[%c12, %c0_16] : memref<36x128xbf16, #tpu.memory_space<vmem>>, vector<4x128xbf16>
    tpu.vector_store %arg9[%c12, %c0_16], %45 {strides = array<i32>} : memref<36x128xbf16, #tpu.memory_space<vmem>>, vector<4x128xbf16>,
    %c0_17 = arith.constant 0 : index
    %c128 = arith.constant 128 : index
    %47 = vector.load %arg8[%c0_17, %c128] : memref<4x384xbf16, #tpu.memory_space<vmem>>, vector<4x128xbf16>
    %c16 = arith.constant 16 : index
    %c0_18 = arith.constant 0 : index
    %48 = vector.load %arg9[%c16, %c0_18] : memref<36x128xbf16, #tpu.memory_space<vmem>>, vector<4x128xbf16>
    tpu.vector_store %arg9[%c16, %c0_18], %47 {strides = array<i32>} : memref<36x128xbf16, #tpu.memory_space<vmem>>, vector<4x128xbf16>,
    %c0_19 = arith.constant 0 : index
    %c129 = arith.constant 129 : index
    %49 = vector.load %arg8[%c0_19, %c129] : memref<4x384xbf16, #tpu.memory_space<vmem>>, vector<4x128xbf16>
    %50 = vector.shape_cast %28 : vector<1x128xi1> to vector<1x128xi1>
    %51 = vector.broadcast %50 : vector<1x128xi1> to vector<4x128xi1>
    %52 = arith.select %51, %49, %29 : vector<4x128xi1>, vector<4x128xbf16>
    %c20 = arith.constant 20 : index
    %c0_20 = arith.constant 0 : index
    %53 = vector.load %arg9[%c20, %c0_20] : memref<36x128xbf16, #tpu.memory_space<vmem>>, vector<4x128xbf16>
    tpu.vector_store %arg9[%c20, %c0_20], %52 {strides = array<i32>} : memref<36x128xbf16, #tpu.memory_space<vmem>>, vector<4x128xbf16>,
    %c0_21 = arith.constant 0 : index
    %c143 = arith.constant 143 : index
    %54 = vector.load %arg8[%c0_21, %c143] : memref<4x384xbf16, #tpu.memory_space<vmem>>, vector<4x128xbf16>
    %55 = vector.shape_cast %26 : vector<1x128xi1> to vector<1x128xi1>
    %56 = vector.broadcast %55 : vector<1x128xi1> to vector<4x128xi1>
    %57 = arith.select %56, %54, %29 : vector<4x128xi1>, vector<4x128xbf16>
    %c24 = arith.constant 24 : index
    %c0_22 = arith.constant 0 : index
    %58 = vector.load %arg9[%c24, %c0_22] : memref<36x128xbf16, #tpu.memory_space<vmem>>, vector<4x128xbf16>
    tpu.vector_store %arg9[%c24, %c0_22], %57 {strides = array<i32>} : memref<36x128xbf16, #tpu.memory_space<vmem>>, vector<4x128xbf16>,
    %c0_23 = arith.constant 0 : index
    %c144 = arith.constant 144 : index
    %59 = vector.load %arg8[%c0_23, %c144] : memref<4x384xbf16, #tpu.memory_space<vmem>>, vector<4x128xbf16>
    %c28 = arith.constant 28 : index
    %c0_24 = arith.constant 0 : index
    %60 = vector.load %arg9[%c28, %c0_24] : memref<36x128xbf16, #tpu.memory_space<vmem>>, vector<4x128xbf16>
    tpu.vector_store %arg9[%c28, %c0_24], %59 {strides = array<i32>} : memref<36x128xbf16, #tpu.memory_space<vmem>>, vector<4x128xbf16>,
    %c0_25 = arith.constant 0 : index
    %c145 = arith.constant 145 : index
    %61 = vector.load %arg8[%c0_25, %c145] : memref<4x384xbf16, #tpu.memory_space<vmem>>, vector<4x128xbf16>
    %62 = vector.shape_cast %28 : vector<1x128xi1> to vector<1x128xi1>
    %63 = vector.broadcast %62 : vector<1x128xi1> to vector<4x128xi1>
    %64 = arith.select %63, %61, %29 : vector<4x128xi1>, vector<4x128xbf16>
    %c32 = arith.constant 32 : index
    %c0_26 = arith.constant 0 : index
    %65 = vector.load %arg9[%c32, %c0_26] : memref<36x128xbf16, #tpu.memory_space<vmem>>, vector<4x128xbf16>
    tpu.vector_store %arg9[%c32, %c0_26], %64 {strides = array<i32>} : memref<36x128xbf16, #tpu.memory_space<vmem>>, vector<4x128xbf16>,
    %c0_27 = arith.constant 0 : index
    %c0_28 = arith.constant 0 : index
    %66 = vector.load %arg3[%c0_27, %c0_28] : memref<8x36xbf16, #tpu.memory_space<vmem>>, vector<8x36xbf16>
    %c0_29 = arith.constant 0 : index
    %c0_30 = arith.constant 0 : index
    %67 = vector.load %arg9[%c0_29, %c0_30] : memref<36x128xbf16, #tpu.memory_space<vmem>>, vector<36x128xbf16>
    %cst_31 = arith.constant dense<0.000000e+00> : vector<8x128xf32>
    %68 = tpu.matmul %66, %67, %cst_31 {dimension_numbers = #tpu.dot_dimension_numbers<[1], [0], [0], [1], [0, 0, 1, 1], [], []>} : vector<8x36xbf16>, vector<36x128xbf16>, vector<8x128xf32> -> vector<8x128xf32>
    %69 = arith.truncf %68 : vector<8x128xf32> to vector<8x128xbf16>
    %c0_32 = arith.constant 0 : index
    %c0_33 = arith.constant 0 : index
    %c0_34 = arith.constant 0 : index
    %70 = vector.load %arg5[%c0_32, %c0_33, %c0_34] : memref<1x8x128xbf16, #tpu.memory_space<vmem>>, vector<1x8x128xbf16>
    %71 = vector.shape_cast %70 : vector<1x8x128xbf16> to vector<8x128xbf16>
    %72 = vector.shape_cast %69 : vector<8x128xbf16> to vector<1x8x128xbf16>
    tpu.vector_store %arg5[%c0_32, %c0_33, %c0_34], %72 {strides = array<i32>} : memref<1x8x128xbf16, #tpu.memory_space<vmem>>, vector<1x8x128xbf16>,
    %cst_35 = arith.constant dense<0.000000e+00> : vector<8xf32>
    %73 = vector.multi_reduction <add>, %68, %cst_35 [1] : vector<8x128xf32> to vector<8xf32>
    %74 = vector.shape_cast %73 : vector<8xf32> to vector<8x1xf32>
    %cst_36 = arith.constant 7.812500e-03 : f32
    %75 = vector.broadcast %cst_36 : f32 to vector<8x1xf32>
    %76 = arith.mulf %74, %75 : vector<8x1xf32>
    %77 = vector.broadcast %76 : vector<8x1xf32> to vector<8x128xf32>
    %78 = arith.subf %68, %77 : vector<8x128xf32>
    %79 = arith.mulf %78, %78 : vector<8x128xf32>
    %cst_37 = arith.constant dense<0.000000e+00> : vector<8xf32>
    %80 = vector.multi_reduction <add>, %79, %cst_37 [1] : vector<8x128xf32> to vector<8xf32>
    %81 = vector.shape_cast %80 : vector<8xf32> to vector<8x1xf32>
    %82 = tpu.concatenate %74, %81 in 1 : vector<8x1xf32>, vector<8x1xf32> -> vector<8x2xf32>
    %c0_38 = arith.constant 0 : index
    %c0_39 = arith.constant 0 : index
    %c0_40 = arith.constant 0 : index
    %c0_41 = arith.constant 0 : index
    %83 = vector.load %arg6[%c0_38, %c0_39, %c0_40, %c0_41] : memref<1x1x8x2xf32, #tpu.memory_space<vmem>>, vector<1x1x8x2xf32>
    %84 = vector.shape_cast %83 : vector<1x1x8x2xf32> to vector<8x2xf32>
    %85 = vector.shape_cast %82 : vector<8x2xf32> to vector<1x1x8x2xf32>
    tpu.vector_store %arg6[%c0_38, %c0_39, %c0_40, %c0_41], %85 {strides = array<i32>} : memref<1x1x8x2xf32, #tpu.memory_space<vmem>>, vector<1x1x8x2xf32>,
    return
  }
  func.func @transform_0(%arg0: i32, %arg1: i32) -> (i32, i32, i32) {
    %c0_i32 = arith.constant 0 : i32
    %c0_i32_0 = arith.constant 0 : i32
    %c0_i32_1 = arith.constant 0 : i32
    return %arg0, %c0_i32, %c0_i32_0 : i32, i32, i32
  }
  func.func @transform_1(%arg0: i32, %arg1: i32) -> (i32, i32) {
    %c0_i32 = arith.constant 0 : i32
    %c0_i32_0 = arith.constant 0 : i32
    %c0_i32_1 = arith.constant 0 : i32
    return %c0_i32, %c0_i32_0 : i32, i32
  }
  func.func @transform_2(%arg0: i32, %arg1: i32) -> (i32, i32) {
    %c0_i32 = arith.constant 0 : i32
    %c0_i32_0 = arith.constant 0 : i32
    %c0_i32_1 = arith.constant 0 : i32
    return %c0_i32, %c0_i32_0 : i32, i32
  }
  func.func @transform_3(%arg0: i32, %arg1: i32) -> (i32, i32, i32) {
    %c0_i32 = arith.constant 0 : i32
    %c0_i32_0 = arith.constant 0 : i32
    return %arg0, %c0_i32, %arg1 : i32, i32, i32
  }
  func.func @transform_4(%arg0: i32, %arg1: i32) -> (i32, i32, i32, i32) {
    %c0_i32 = arith.constant 0 : i32
    %c0_i32_0 = arith.constant 0 : i32
    %c0_i32_1 = arith.constant 0 : i32
    return %arg0, %arg1, %c0_i32, %c0_i32_0 : i32, i32, i32, i32
  }
}

module attributes {stable_mosaic.version = 11 : i64} {
  func.func @_conv_bn_stats_kernel(%arg0: i32, %arg1: i32, %arg2: memref<1x8x256xbf16, #tpu.memory_space<vmem>>, %arg3: memref<8x72xbf16, #tpu.memory_space<vmem>>, %arg4: memref<8x2xf32, #tpu.memory_space<vmem>>, %arg5: memref<1x8x128xbf16, #tpu.memory_space<vmem>>, %arg6: memref<1x1x8x2xf32, #tpu.memory_space<vmem>>, %arg7: memref<8x512xbf16, #tpu.memory_space<vmem>>, %arg8: memref<8x384xbf16, #tpu.memory_space<vmem>>, %arg9: memref<72x128xbf16, #tpu.memory_space<vmem>>) attributes {dimension_semantics = [#tpu.dimension_semantics<parallel>, #tpu.dimension_semantics<arbitrary>], iteration_bounds = array<i64: 2, 2>, scalar_prefetch = 0 : i64, scratch_operands = 3 : i64, tpu.core_type = #tpu.core_type<tc>, window_params = [{transform_indices = @transform_0, window_bounds = array<i64: 1, 8, 256>}, {pipeline_mode = #tpu.pipeline_mode<synchronous>, transform_indices = @transform_1, window_bounds = array<i64: 8, 72>}, {pipeline_mode = #tpu.pipeline_mode<synchronous>, transform_indices = @transform_2, window_bounds = array<i64: 8, 2>}, {transform_indices = @transform_3, window_bounds = array<i64: 1, 8, 128>}, {transform_indices = @transform_4, window_bounds = array<i64: 1, 1, 8, 2>}]} {
    %c0_i32 = arith.constant 0 : i32
    %0 = arith.cmpi eq, %arg1, %c0_i32 : i32
    %1 = arith.extui %0 : i1 to i32
    %c0_i32_0 = arith.constant 0 : i32
    %2 = arith.cmpi ne, %1, %c0_i32_0 : i32
    scf.if %2 {
      %c0_42 = arith.constant 0 : index
      %c0_43 = arith.constant 0 : index
      %c0_44 = arith.constant 0 : index
      %86 = vector.load %arg2[%c0_42, %c0_43, %c0_44] : memref<1x8x256xbf16, #tpu.memory_space<vmem>>, vector<1x8x256xbf16>
      %87 = vector.shape_cast %86 : vector<1x8x256xbf16> to vector<8x256xbf16>
      %88 = arith.extf %87 : vector<8x256xbf16> to vector<8x256xf32>
      %c0_45 = arith.constant 0 : index
      %c0_46 = arith.constant 0 : index
      %89 = vector.load %arg4[%c0_45, %c0_46] : memref<8x2xf32, #tpu.memory_space<vmem>>, vector<8x1xf32>
      %90 = vector.broadcast %89 : vector<8x1xf32> to vector<8x256xf32>
      %91 = arith.mulf %88, %90 : vector<8x256xf32>
      %c0_47 = arith.constant 0 : index
      %c1 = arith.constant 1 : index
      %92 = vector.load %arg4[%c0_47, %c1] : memref<8x2xf32, #tpu.memory_space<vmem>>, vector<8x1xf32>
      %93 = vector.broadcast %92 : vector<8x1xf32> to vector<8x256xf32>
      %94 = arith.addf %91, %93 : vector<8x256xf32>
      %cst_48 = arith.constant 0.000000e+00 : f32
      %95 = vector.broadcast %cst_48 : f32 to vector<8x256xf32>
      %96 = arith.maximumf %94, %95 : vector<8x256xf32>
      %cst_49 = arith.constant 0.000000e+00 : bf16
      %97 = vector.broadcast %cst_49 : bf16 to vector<8x128xbf16>
      %c0_50 = arith.constant 0 : index
      %c0_51 = arith.constant 0 : index
      %98 = vector.load %arg7[%c0_50, %c0_51] : memref<8x512xbf16, #tpu.memory_space<vmem>>, vector<8x128xbf16>
      tpu.vector_store %arg7[%c0_50, %c0_51], %97 {strides = array<i32>} : memref<8x512xbf16, #tpu.memory_space<vmem>>, vector<8x128xbf16>,
      %99 = arith.truncf %96 : vector<8x256xf32> to vector<8x256xbf16>
      %c0_52 = arith.constant 0 : index
      %c128_53 = arith.constant 128 : index
      %100 = vector.load %arg7[%c0_52, %c128_53] : memref<8x512xbf16, #tpu.memory_space<vmem>>, vector<8x256xbf16>
      tpu.vector_store %arg7[%c0_52, %c128_53], %99 {strides = array<i32>} : memref<8x512xbf16, #tpu.memory_space<vmem>>, vector<8x256xbf16>,
      %cst_54 = arith.constant 0.000000e+00 : bf16
      %101 = vector.broadcast %cst_54 : bf16 to vector<8x128xbf16>
      %c0_55 = arith.constant 0 : index
      %c384 = arith.constant 384 : index
      %102 = vector.load %arg7[%c0_55, %c384] : memref<8x512xbf16, #tpu.memory_space<vmem>>, vector<8x128xbf16>
      tpu.vector_store %arg7[%c0_55, %c384], %101 {strides = array<i32>} : memref<8x512xbf16, #tpu.memory_space<vmem>>, vector<8x128xbf16>,
    } else {
    }
    %c128_i32 = arith.constant 128 : i32
    %3 = arith.muli %arg1, %c128_i32 : i32
    %4 = tpu.assume_multiple %3, 128 : i32
    %c0 = arith.constant 0 : index
    %5 = arith.index_cast %4 : i32 to index
    %6 = vector.load %arg7[%c0, %5] : memref<8x512xbf16, #tpu.memory_space<vmem>>, vector<8x384xbf16>
    %c0_1 = arith.constant 0 : index
    %c0_2 = arith.constant 0 : index
    %7 = vector.load %arg8[%c0_1, %c0_2] : memref<8x384xbf16, #tpu.memory_space<vmem>>, vector<8x384xbf16>
    tpu.vector_store %arg8[%c0_1, %c0_2], %6 {strides = array<i32>} : memref<8x384xbf16, #tpu.memory_space<vmem>>, vector<8x384xbf16>,
    %8 = tpu.iota {dimensions = array<i32: 1>} : vector<1x128xi32>
    %c16_i32 = arith.constant 16 : i32
    %c0_i32_3 = arith.constant 0 : i32
    %9 = arith.cmpi eq, %c16_i32, %c0_i32_3 : i32
    %c1_i32 = arith.constant 1 : i32
    %10 = arith.select %9, %c1_i32, %c16_i32 : i32
    %11 = vector.broadcast %10 : i32 to vector<1x128xi32>
    %12 = arith.remsi %8, %11 : vector<1x128xi32>
    %c0_i32_4 = arith.constant 0 : i32
    %13 = vector.broadcast %c0_i32_4 : i32 to vector<1x128xi32>
    %14 = arith.cmpi ne, %12, %13 : vector<1x128xi32>
    %c0_i32_5 = arith.constant 0 : i32
    %15 = vector.broadcast %c0_i32_5 : i32 to vector<1x128xi32>
    %16 = arith.cmpi slt, %12, %15 : vector<1x128xi32>
    %c0_i32_6 = arith.constant 0 : i32
    %17 = arith.cmpi slt, %10, %c0_i32_6 : i32
    %18 = vector.broadcast %17 : i1 to vector<1x128xi1>
    %19 = vector.broadcast %18 : vector<1x128xi1> to vector<1x128xi1>
    %20 = arith.xori %16, %19 : vector<1x128xi1>
    %21 = arith.andi %20, %14 : vector<1x128xi1>
    %22 = vector.broadcast %10 : i32 to vector<1x128xi32>
    %23 = arith.addi %12, %22 : vector<1x128xi32>
    %24 = arith.select %21, %23, %12 : vector<1x128xi1>, vector<1x128xi32>
    %c0_i32_7 = arith.constant 0 : i32
    %25 = vector.broadcast %c0_i32_7 : i32 to vector<1x128xi32>
    %26 = arith.cmpi sgt, %24, %25 : vector<1x128xi32>
    %c15_i32 = arith.constant 15 : i32
    %27 = vector.broadcast %c15_i32 : i32 to vector<1x128xi32>
    %28 = arith.cmpi slt, %24, %27 : vector<1x128xi32>
    %cst = arith.constant 0.000000e+00 : bf16
    %29 = vector.broadcast %cst : bf16 to vector<8x128xbf16>
    %c0_8 = arith.constant 0 : index
    %c111 = arith.constant 111 : index
    %30 = vector.load %arg8[%c0_8, %c111] : memref<8x384xbf16, #tpu.memory_space<vmem>>, vector<8x128xbf16>
    %31 = vector.shape_cast %26 : vector<1x128xi1> to vector<1x128xi1>
    %32 = vector.broadcast %31 : vector<1x128xi1> to vector<8x128xi1>
    %33 = arith.select %32, %30, %29 : vector<8x128xi1>, vector<8x128xbf16>
    %c0_9 = arith.constant 0 : index
    %c0_10 = arith.constant 0 : index
    %34 = vector.load %arg9[%c0_9, %c0_10] : memref<72x128xbf16, #tpu.memory_space<vmem>>, vector<8x128xbf16>
    tpu.vector_store %arg9[%c0_9, %c0_10], %33 {strides = array<i32>} : memref<72x128xbf16, #tpu.memory_space<vmem>>, vector<8x128xbf16>,
    %c0_11 = arith.constant 0 : index
    %c112 = arith.constant 112 : index
    %35 = vector.load %arg8[%c0_11, %c112] : memref<8x384xbf16, #tpu.memory_space<vmem>>, vector<8x128xbf16>
    %c8 = arith.constant 8 : index
    %c0_12 = arith.constant 0 : index
    %36 = vector.load %arg9[%c8, %c0_12] : memref<72x128xbf16, #tpu.memory_space<vmem>>, vector<8x128xbf16>
    tpu.vector_store %arg9[%c8, %c0_12], %35 {strides = array<i32>} : memref<72x128xbf16, #tpu.memory_space<vmem>>, vector<8x128xbf16>,
    %c0_13 = arith.constant 0 : index
    %c113 = arith.constant 113 : index
    %37 = vector.load %arg8[%c0_13, %c113] : memref<8x384xbf16, #tpu.memory_space<vmem>>, vector<8x128xbf16>
    %38 = vector.shape_cast %28 : vector<1x128xi1> to vector<1x128xi1>
    %39 = vector.broadcast %38 : vector<1x128xi1> to vector<8x128xi1>
    %40 = arith.select %39, %37, %29 : vector<8x128xi1>, vector<8x128xbf16>
    %c16 = arith.constant 16 : index
    %c0_14 = arith.constant 0 : index
    %41 = vector.load %arg9[%c16, %c0_14] : memref<72x128xbf16, #tpu.memory_space<vmem>>, vector<8x128xbf16>
    tpu.vector_store %arg9[%c16, %c0_14], %40 {strides = array<i32>} : memref<72x128xbf16, #tpu.memory_space<vmem>>, vector<8x128xbf16>,
    %c0_15 = arith.constant 0 : index
    %c127 = arith.constant 127 : index
    %42 = vector.load %arg8[%c0_15, %c127] : memref<8x384xbf16, #tpu.memory_space<vmem>>, vector<8x128xbf16>
    %43 = vector.shape_cast %26 : vector<1x128xi1> to vector<1x128xi1>
    %44 = vector.broadcast %43 : vector<1x128xi1> to vector<8x128xi1>
    %45 = arith.select %44, %42, %29 : vector<8x128xi1>, vector<8x128xbf16>
    %c24 = arith.constant 24 : index
    %c0_16 = arith.constant 0 : index
    %46 = vector.load %arg9[%c24, %c0_16] : memref<72x128xbf16, #tpu.memory_space<vmem>>, vector<8x128xbf16>
    tpu.vector_store %arg9[%c24, %c0_16], %45 {strides = array<i32>} : memref<72x128xbf16, #tpu.memory_space<vmem>>, vector<8x128xbf16>,
    %c0_17 = arith.constant 0 : index
    %c128 = arith.constant 128 : index
    %47 = vector.load %arg8[%c0_17, %c128] : memref<8x384xbf16, #tpu.memory_space<vmem>>, vector<8x128xbf16>
    %c32 = arith.constant 32 : index
    %c0_18 = arith.constant 0 : index
    %48 = vector.load %arg9[%c32, %c0_18] : memref<72x128xbf16, #tpu.memory_space<vmem>>, vector<8x128xbf16>
    tpu.vector_store %arg9[%c32, %c0_18], %47 {strides = array<i32>} : memref<72x128xbf16, #tpu.memory_space<vmem>>, vector<8x128xbf16>,
    %c0_19 = arith.constant 0 : index
    %c129 = arith.constant 129 : index
    %49 = vector.load %arg8[%c0_19, %c129] : memref<8x384xbf16, #tpu.memory_space<vmem>>, vector<8x128xbf16>
    %50 = vector.shape_cast %28 : vector<1x128xi1> to vector<1x128xi1>
    %51 = vector.broadcast %50 : vector<1x128xi1> to vector<8x128xi1>
    %52 = arith.select %51, %49, %29 : vector<8x128xi1>, vector<8x128xbf16>
    %c40 = arith.constant 40 : index
    %c0_20 = arith.constant 0 : index
    %53 = vector.load %arg9[%c40, %c0_20] : memref<72x128xbf16, #tpu.memory_space<vmem>>, vector<8x128xbf16>
    tpu.vector_store %arg9[%c40, %c0_20], %52 {strides = array<i32>} : memref<72x128xbf16, #tpu.memory_space<vmem>>, vector<8x128xbf16>,
    %c0_21 = arith.constant 0 : index
    %c143 = arith.constant 143 : index
    %54 = vector.load %arg8[%c0_21, %c143] : memref<8x384xbf16, #tpu.memory_space<vmem>>, vector<8x128xbf16>
    %55 = vector.shape_cast %26 : vector<1x128xi1> to vector<1x128xi1>
    %56 = vector.broadcast %55 : vector<1x128xi1> to vector<8x128xi1>
    %57 = arith.select %56, %54, %29 : vector<8x128xi1>, vector<8x128xbf16>
    %c48 = arith.constant 48 : index
    %c0_22 = arith.constant 0 : index
    %58 = vector.load %arg9[%c48, %c0_22] : memref<72x128xbf16, #tpu.memory_space<vmem>>, vector<8x128xbf16>
    tpu.vector_store %arg9[%c48, %c0_22], %57 {strides = array<i32>} : memref<72x128xbf16, #tpu.memory_space<vmem>>, vector<8x128xbf16>,
    %c0_23 = arith.constant 0 : index
    %c144 = arith.constant 144 : index
    %59 = vector.load %arg8[%c0_23, %c144] : memref<8x384xbf16, #tpu.memory_space<vmem>>, vector<8x128xbf16>
    %c56 = arith.constant 56 : index
    %c0_24 = arith.constant 0 : index
    %60 = vector.load %arg9[%c56, %c0_24] : memref<72x128xbf16, #tpu.memory_space<vmem>>, vector<8x128xbf16>
    tpu.vector_store %arg9[%c56, %c0_24], %59 {strides = array<i32>} : memref<72x128xbf16, #tpu.memory_space<vmem>>, vector<8x128xbf16>,
    %c0_25 = arith.constant 0 : index
    %c145 = arith.constant 145 : index
    %61 = vector.load %arg8[%c0_25, %c145] : memref<8x384xbf16, #tpu.memory_space<vmem>>, vector<8x128xbf16>
    %62 = vector.shape_cast %28 : vector<1x128xi1> to vector<1x128xi1>
    %63 = vector.broadcast %62 : vector<1x128xi1> to vector<8x128xi1>
    %64 = arith.select %63, %61, %29 : vector<8x128xi1>, vector<8x128xbf16>
    %c64 = arith.constant 64 : index
    %c0_26 = arith.constant 0 : index
    %65 = vector.load %arg9[%c64, %c0_26] : memref<72x128xbf16, #tpu.memory_space<vmem>>, vector<8x128xbf16>
    tpu.vector_store %arg9[%c64, %c0_26], %64 {strides = array<i32>} : memref<72x128xbf16, #tpu.memory_space<vmem>>, vector<8x128xbf16>,
    %c0_27 = arith.constant 0 : index
    %c0_28 = arith.constant 0 : index
    %66 = vector.load %arg3[%c0_27, %c0_28] : memref<8x72xbf16, #tpu.memory_space<vmem>>, vector<8x72xbf16>
    %c0_29 = arith.constant 0 : index
    %c0_30 = arith.constant 0 : index
    %67 = vector.load %arg9[%c0_29, %c0_30] : memref<72x128xbf16, #tpu.memory_space<vmem>>, vector<72x128xbf16>
    %cst_31 = arith.constant dense<0.000000e+00> : vector<8x128xf32>
    %68 = tpu.matmul %66, %67, %cst_31 {dimension_numbers = #tpu.dot_dimension_numbers<[1], [0], [0], [1], [0, 0, 1, 1], [], []>} : vector<8x72xbf16>, vector<72x128xbf16>, vector<8x128xf32> -> vector<8x128xf32>
    %69 = arith.truncf %68 : vector<8x128xf32> to vector<8x128xbf16>
    %c0_32 = arith.constant 0 : index
    %c0_33 = arith.constant 0 : index
    %c0_34 = arith.constant 0 : index
    %70 = vector.load %arg5[%c0_32, %c0_33, %c0_34] : memref<1x8x128xbf16, #tpu.memory_space<vmem>>, vector<1x8x128xbf16>
    %71 = vector.shape_cast %70 : vector<1x8x128xbf16> to vector<8x128xbf16>
    %72 = vector.shape_cast %69 : vector<8x128xbf16> to vector<1x8x128xbf16>
    tpu.vector_store %arg5[%c0_32, %c0_33, %c0_34], %72 {strides = array<i32>} : memref<1x8x128xbf16, #tpu.memory_space<vmem>>, vector<1x8x128xbf16>,
    %cst_35 = arith.constant dense<0.000000e+00> : vector<8xf32>
    %73 = vector.multi_reduction <add>, %68, %cst_35 [1] : vector<8x128xf32> to vector<8xf32>
    %74 = vector.shape_cast %73 : vector<8xf32> to vector<8x1xf32>
    %cst_36 = arith.constant 7.812500e-03 : f32
    %75 = vector.broadcast %cst_36 : f32 to vector<8x1xf32>
    %76 = arith.mulf %74, %75 : vector<8x1xf32>
    %77 = vector.broadcast %76 : vector<8x1xf32> to vector<8x128xf32>
    %78 = arith.subf %68, %77 : vector<8x128xf32>
    %79 = arith.mulf %78, %78 : vector<8x128xf32>
    %cst_37 = arith.constant dense<0.000000e+00> : vector<8xf32>
    %80 = vector.multi_reduction <add>, %79, %cst_37 [1] : vector<8x128xf32> to vector<8xf32>
    %81 = vector.shape_cast %80 : vector<8xf32> to vector<8x1xf32>
    %82 = tpu.concatenate %74, %81 in 1 : vector<8x1xf32>, vector<8x1xf32> -> vector<8x2xf32>
    %c0_38 = arith.constant 0 : index
    %c0_39 = arith.constant 0 : index
    %c0_40 = arith.constant 0 : index
    %c0_41 = arith.constant 0 : index
    %83 = vector.load %arg6[%c0_38, %c0_39, %c0_40, %c0_41] : memref<1x1x8x2xf32, #tpu.memory_space<vmem>>, vector<1x1x8x2xf32>
    %84 = vector.shape_cast %83 : vector<1x1x8x2xf32> to vector<8x2xf32>
    %85 = vector.shape_cast %82 : vector<8x2xf32> to vector<1x1x8x2xf32>
    tpu.vector_store %arg6[%c0_38, %c0_39, %c0_40, %c0_41], %85 {strides = array<i32>} : memref<1x1x8x2xf32, #tpu.memory_space<vmem>>, vector<1x1x8x2xf32>,
    return
  }
  func.func @transform_0(%arg0: i32, %arg1: i32) -> (i32, i32, i32) {
    %c0_i32 = arith.constant 0 : i32
    %c0_i32_0 = arith.constant 0 : i32
    %c0_i32_1 = arith.constant 0 : i32
    return %arg0, %c0_i32, %c0_i32_0 : i32, i32, i32
  }
  func.func @transform_1(%arg0: i32, %arg1: i32) -> (i32, i32) {
    %c0_i32 = arith.constant 0 : i32
    %c0_i32_0 = arith.constant 0 : i32
    %c0_i32_1 = arith.constant 0 : i32
    return %c0_i32, %c0_i32_0 : i32, i32
  }
  func.func @transform_2(%arg0: i32, %arg1: i32) -> (i32, i32) {
    %c0_i32 = arith.constant 0 : i32
    %c0_i32_0 = arith.constant 0 : i32
    %c0_i32_1 = arith.constant 0 : i32
    return %c0_i32, %c0_i32_0 : i32, i32
  }
  func.func @transform_3(%arg0: i32, %arg1: i32) -> (i32, i32, i32) {
    %c0_i32 = arith.constant 0 : i32
    %c0_i32_0 = arith.constant 0 : i32
    return %arg0, %c0_i32, %arg1 : i32, i32, i32
  }
  func.func @transform_4(%arg0: i32, %arg1: i32) -> (i32, i32, i32, i32) {
    %c0_i32 = arith.constant 0 : i32
    %c0_i32_0 = arith.constant 0 : i32
    %c0_i32_1 = arith.constant 0 : i32
    return %arg0, %arg1, %c0_i32, %c0_i32_0 : i32, i32, i32, i32
  }
}

module attributes {stable_mosaic.version = 11 : i64} {
  func.func @_bn_relu_kernel(%arg0: i32, %arg1: i32, %arg2: memref<1x8x128xbf16, #tpu.memory_space<vmem>>, %arg3: memref<8x2xf32, #tpu.memory_space<vmem>>, %arg4: memref<1x8x128xf32, #tpu.memory_space<vmem>>) attributes {dimension_semantics = [#tpu.dimension_semantics<parallel>, #tpu.dimension_semantics<parallel>], iteration_bounds = array<i64: 2, 2>, scalar_prefetch = 0 : i64, scratch_operands = 0 : i64, tpu.core_type = #tpu.core_type<tc>, window_params = [{transform_indices = @transform_0, window_bounds = array<i64: 1, 8, 128>}, {pipeline_mode = #tpu.pipeline_mode<synchronous>, transform_indices = @transform_1, window_bounds = array<i64: 8, 2>}, {transform_indices = @transform_2, window_bounds = array<i64: 1, 8, 128>}]} {
    %c0 = arith.constant 0 : index
    %c0_0 = arith.constant 0 : index
    %c0_1 = arith.constant 0 : index
    %0 = vector.load %arg2[%c0, %c0_0, %c0_1] : memref<1x8x128xbf16, #tpu.memory_space<vmem>>, vector<1x8x128xbf16>
    %1 = vector.shape_cast %0 : vector<1x8x128xbf16> to vector<8x128xbf16>
    %2 = arith.extf %1 : vector<8x128xbf16> to vector<8x128xf32>
    %c0_2 = arith.constant 0 : index
    %c0_3 = arith.constant 0 : index
    %3 = vector.load %arg3[%c0_2, %c0_3] : memref<8x2xf32, #tpu.memory_space<vmem>>, vector<8x1xf32>
    %4 = vector.broadcast %3 : vector<8x1xf32> to vector<8x128xf32>
    %5 = arith.mulf %2, %4 : vector<8x128xf32>
    %c0_4 = arith.constant 0 : index
    %c1 = arith.constant 1 : index
    %6 = vector.load %arg3[%c0_4, %c1] : memref<8x2xf32, #tpu.memory_space<vmem>>, vector<8x1xf32>
    %7 = vector.broadcast %6 : vector<8x1xf32> to vector<8x128xf32>
    %8 = arith.addf %5, %7 : vector<8x128xf32>
    %cst = arith.constant 0.000000e+00 : f32
    %9 = vector.broadcast %cst : f32 to vector<8x128xf32>
    %10 = arith.maximumf %8, %9 : vector<8x128xf32>
    %c0_5 = arith.constant 0 : index
    %c0_6 = arith.constant 0 : index
    %c0_7 = arith.constant 0 : index
    %11 = vector.load %arg4[%c0_5, %c0_6, %c0_7] : memref<1x8x128xf32, #tpu.memory_space<vmem>>, vector<1x8x128xf32>
    %12 = vector.shape_cast %11 : vector<1x8x128xf32> to vector<8x128xf32>
    %13 = vector.shape_cast %10 : vector<8x128xf32> to vector<1x8x128xf32>
    tpu.vector_store %arg4[%c0_5, %c0_6, %c0_7], %13 {strides = array<i32>} : memref<1x8x128xf32, #tpu.memory_space<vmem>>, vector<1x8x128xf32>,
    return
  }
  func.func @transform_0(%arg0: i32, %arg1: i32) -> (i32, i32, i32) {
    %c0_i32 = arith.constant 0 : i32
    %c0_i32_0 = arith.constant 0 : i32
    return %arg0, %c0_i32, %arg1 : i32, i32, i32
  }
  func.func @transform_1(%arg0: i32, %arg1: i32) -> (i32, i32) {
    %c0_i32 = arith.constant 0 : i32
    %c0_i32_0 = arith.constant 0 : i32
    %c0_i32_1 = arith.constant 0 : i32
    return %c0_i32, %c0_i32_0 : i32, i32
  }
  func.func @transform_2(%arg0: i32, %arg1: i32) -> (i32, i32, i32) {
    %c0_i32 = arith.constant 0 : i32
    %c0_i32_0 = arith.constant 0 : i32
    return %arg0, %c0_i32, %arg1 : i32, i32, i32
  }
}

</mosaic_0001>

<llo_original>
// kernel: double_conv.5
$region0: #{double_conv.5}
  #allocation0 [shape = 'u32[]', space=smem, size = 0x4, offset = 0x4, fixed_abs, tag = 'smem constant byte address 0x4 - core index']
  #allocation1 [shape = 'u32[144,128]{1,0:T(1,128)}', space=vmem, size = 0x12000, scoped, tag = 'internal scratch']
  %s0 = inlined_call_operand.vmem [shape: bf16[2,8,256], index: 0, kind: input, shape index: {}]
  %s1 = inlined_call_operand.vmem [shape: f32[8,2], index: 1, kind: input, shape index: {}]
  %s2 = inlined_call_operand.vmem [shape: f32[2,8,256], index: 2, kind: output, shape index: {}]
  %s3 = sld [smem:[#allocation0]]
  $region41: #{double_conv.5} parent=0
    _
  %s5 = ssub.s32 1, %s3
  %s6 = scalar_select 0, %s5, %s3
  loop: start=0, step=1, limit=6
  $region2: #{double_conv.5} parent=0 // loop_pre_header
    _
  $region3: #{double_conv.5} parent=0 // loop_header
    %s8 = sphi 0, %s12
    %p9 = scmp.ge.s32.totalorder %s8, 6
    %s15 = sphi 0, %s27
    %s16 = sphi 0, %s23
    %s17 = sphi 0, %s15
    %s18 = sphi 0, %s16
    %s19 = sphi 0, %s17
    %s20 = sphi 0, %s18
    %s32 = sphi 0, %s34
    %s35 = sphi 0, %s32
    %s36 = sphi 0, %s35
    %s52 = sphi 0, %s36
    %s56 = sphi 0, %s56
    %s58 = sphi 0, %s56
    %s59 = sphi 0, %s58
    %s73 = sphi 0, %s59
    %s81 = sphi 0, %s83
    %s84 = sphi 0, %s81
    %s85 = sphi 0, %s84
    %s101 = sphi 0, %s85
  $region4: #{double_conv.5} parent=0 // loop_header_branch
    %11 = sbr.rel (%p9) target = $region8
  $region5: #{double_conv.5} parent=0 // loop_body
    %s13 = ssub.s32 %s8, 1
    %s14 = ssub.s32 %s8, 2
    %s21 = sadd.s32 1, %s16
    %p22 = scmp.ge.s32.totalorder %s21, 2
    %s23 = scalar_select %p22, 0, %s21
    %s24 = sadd.s32 1, %s15
    %s25 = scalar_select %p22, %s24, %s15
    %p26 = scmp.ge.s32.totalorder %s25, 2
    %s27 = scalar_select %p26, 0, %s25
    %s28 = ssub.s32 %s15, %s27
    %s29 = ssub.s32 %s16, %s23
    %s30 = sor.u32 %s28, %s29
    %p31 = scmp.eq.s32.totalorder %s30, 0
    %s33 = sadd.s32 %s32, 1
    %s34 = scalar_select %p31, %s32, %s33
    %p37 = pneg %p31
    %p38 = scmp.eq.s32.totalorder %s8, 3
    %p39 = por %p37, %p38
    %p40 = scmp.ne.s32.totalorder %s32, %s35
    %p41 = scmp.eq.s32.totalorder %s8, 0
    %p42 = por %p40, %p41
    %p43 = scmp.ne.s32.totalorder %s32, %s35
    %p44 = scmp.eq.s32.totalorder %s13, 3
    %p45 = por %p43, %p44
    %p46 = scmp.ne.s32.totalorder %s35, %s36
    %p47 = scmp.eq.s32.totalorder %s13, 0
    %p48 = por %p46, %p47
    %p49 = scmp.ne.s32.totalorder %s35, %s36
    %p50 = scmp.eq.s32.totalorder %s14, 3
    %p51 = por %p49, %p50
    %p53 = scmp.ne.s32.totalorder %s36, %s52
    %p54 = scmp.eq.s32.totalorder %s14, 0
    %p55 = por %p53, %p54
    %s57 = sadd.s32 %s56, 1
    %p60 = scmp.eq.s32.totalorder %s8, 3
    %p61 = scmp.ne.s32.totalorder %s56, %s58
    %p62 = scmp.eq.s32.totalorder %s8, 0
    %p63 = por %p61, %p62
    %p64 = scmp.ne.s32.totalorder %s56, %s58
    %p65 = scmp.eq.s32.totalorder %s13, 3
    %p66 = por %p64, %p65
    %p67 = scmp.ne.s32.totalorder %s58, %s59
    %p68 = scmp.eq.s32.totalorder %s13, 0
    %p69 = por %p67, %p68
    %p70 = scmp.ne.s32.totalorder %s58, %s59
    %p71 = scmp.eq.s32.totalorder %s14, 3
    %p72 = por %p70, %p71
    %p74 = scmp.ne.s32.totalorder %s59, %s73
    %p75 = scmp.eq.s32.totalorder %s14, 0
    %p76 = por %p74, %p75
    %s77 = ssub.s32 %s15, %s27
    %s78 = ssub.s32 %s16, %s23
    %s79 = sor.u32 %s77, %s78
    %p80 = scmp.eq.s32.totalorder %s79, 0
    %s82 = sadd.s32 %s81, 1
    %s83 = scalar_select %p80, %s81, %s82
    %p86 = pneg %p80
    %p87 = scmp.eq.s32.totalorder %s8, 3
    %p88 = por %p86, %p87
    %p89 = scmp.ne.s32.totalorder %s81, %s84
    %p90 = scmp.eq.s32.totalorder %s8, 0
    %p91 = por %p89, %p90
    %p92 = scmp.ne.s32.totalorder %s81, %s84
    %p93 = scmp.eq.s32.totalorder %s13, 3
    %p94 = por %p92, %p93
    %p95 = scmp.ne.s32.totalorder %s84, %s85
    %p96 = scmp.eq.s32.totalorder %s13, 0
    %p97 = por %p95, %p96
    %p98 = scmp.ne.s32.totalorder %s84, %s85
    %p99 = scmp.eq.s32.totalorder %s14, 3
    %p100 = por %p98, %p99
    %p102 = scmp.ne.s32.totalorder %s85, %s101
    %p103 = scmp.eq.s32.totalorder %s14, 0
    %p104 = por %p102, %p103
    %p105 = scmp.le.s32.totalorder 1, %s8
    %p106 = scmp.lt.s32.totalorder %s8, 5
    %p107 = pnand %p105, %p106
    %p108 = pneg %p107
    // Predicated region
    $region9: #{double_conv.5} parent=5 // pred_check
      _
    $region10: #{double_conv.5} parent=5 // pred_check_branch
      %110 = sbr.rel (%p107) target = $region12
    $region11: #{double_conv.5} parent=5 // pred_region
      %s111 = ssub.s32 %s8, 1
      // Predicated region
      $region13: #{double_conv.5} parent=11 // pred_check
        %p112 = pneg %p69
      $region14: #{double_conv.5} parent=11 // pred_check_branch
        %114 = sbr.rel (%p112) target = $region16
      $region15: #{double_conv.5} parent=11 // pred_region
        _
      $region16: #{double_conv.5} parent=11 // pred_fallthru
        _
    $region12: #{double_conv.5} parent=5 // pred_fallthru
      _
    %p115 = scmp.lt.s32.totalorder %s8, 4
    // Predicated region
    $region17: #{double_conv.5} parent=5 // pred_check
      %p116 = pneg %p115
    $region18: #{double_conv.5} parent=5 // pred_check_branch
      %118 = sbr.rel (%p116) target = $region20
    $region19: #{double_conv.5} parent=5 // pred_region
      // Predicated region
      $region21: #{double_conv.5} parent=19 // pred_check
        %p119 = pneg %p42
      $region22: #{double_conv.5} parent=19 // pred_check_branch
        %121 = sbr.rel (%p119) target = $region24
      $region23: #{double_conv.5} parent=19 // pred_region
        %p122 = scmp.lt.s32.totalorder %s15, 1
        %s123 = scalar_select %p122, %s15, 1
        %p124 = scmp.lt.s32.totalorder %s16, 1
        %s125 = scalar_select %p124, %s16, 1
        %s126 = smul.addr %s123, 2
        %s127 = sadd.s32 %s125, %s126
        %s128 = smul.addr %s127, 4
        %s129 = scalar_lea.vmem %s0, %s128
      $region24: #{double_conv.5} parent=19 // pred_fallthru
        _
    $region20: #{double_conv.5} parent=5 // pred_fallthru
      _
    %p130 = scmp.le.s32.totalorder 1, %s8
    %p131 = scmp.lt.s32.totalorder %s8, 5
    %p132 = pnand %p130, %p131
    %p133 = pneg %p132
    // Predicated region
    $region25: #{double_conv.5} parent=5 // pred_check
      _
    $region26: #{double_conv.5} parent=5 // pred_check_branch
      %135 = sbr.rel (%p132) target = $region28
    $region27: #{double_conv.5} parent=5 // pred_region
      %s136 = ssub.s32 %s8, 1
      %p137 = scmp.lt.s32.totalorder %s17, 1
      %s138 = scalar_select %p137, %s17, 1
      %p139 = scmp.lt.s32.totalorder %s18, 1
      %s140 = scalar_select %p139, %s18, 1
      %s141 = smul.addr %s138, 2
      %s142 = sadd.s32 %s140, %s141
      %s143 = smul.addr %s142, 4
      %s144 = scalar_lea.vmem %s0, %s143
      %p145 = pneg %p48
      %p146 = pneg %p45
      %p147 = pneg %p69
      %p148 = pneg %p66
      %p149 = pneg %p97
      %p150 = pneg %p94
      %p151 = scmp.lt.s32.totalorder %s17, 1
      %s152 = scalar_select %p151, %s17, 1
      %p153 = scmp.lt.s32.totalorder %s18, 1
      %s154 = scalar_select %p153, %s18, 1
      %s155 = smul.addr %s152, 2
      %s156 = sadd.s32 %s154, %s155
      %s157 = smul.addr %s156, 8
      %s158 = scalar_lea.vmem %s2, %s157
      %p159 = scmp.lt.s32.totalorder %s17, 1
      %s160 = scalar_select %p159, %s17, 1
      %p161 = scmp.lt.s32.totalorder %s18, 1
      %s162 = scalar_select %p161, %s18, 1
      %s163 = smul.addr %s160, 2
      %s164 = sadd.s32 %s162, %s163
      %s165 = smul.addr %s164, 4
      %s166 = scalar_lea.vmem %s0, %s165
      %p167 = scmp.lt.s32.totalorder %s17, 1
      %s168 = scalar_select %p167, %s17, 1
      %p169 = scmp.lt.s32.totalorder %s18, 1
      %s170 = scalar_select %p169, %s18, 1
      %s171 = smul.addr %s168, 2
      %s172 = sadd.s32 %s170, %s171
      %s173 = smul.addr %s172, 8
      %s174 = scalar_lea.vmem %s2, %s173
      %v175 = vld [vmem:[%s166] sm:$0xf]
      %v176 = vunpack.c.l.bf16 %v175
      %v177 = vld [vmem:[%s1] sm:$0xff]
      %179 = vset.pattern.permute.xlu0 0
      %180 = vperm.xlu0 %179, %v177
      %v181 = vpop.permute.xlu0 %180
      %v183 = vmul.f32 %v176, %v181
      %184 = vset.pattern.permute.xlu0 1
      %185 = vperm.xlu0 %184, %v177
      %v186 = vpop.permute.xlu0 %185
      %v188 = vadd.f32 %v183, %v186
      %v189 = vmax.f32 %v188, 0.0
      %190 = vst [vmem:[%s174] sm:$0xff] %v189
      %p191 = scmp.lt.s32.totalorder %s17, 1
      %s192 = scalar_select %p191, %s17, 1
      %p193 = scmp.lt.s32.totalorder %s18, 1
      %s194 = scalar_select %p193, %s18, 1
      %s195 = smul.addr %s192, 2
      %s196 = sadd.s32 %s194, %s195
      %s197 = smul.addr %s196, 8
      %s198 = scalar_lea.vmem %s2, %s197
      // Predicated region
      $region29: #{double_conv.5} parent=27 // pred_check
        %p199 = pneg %p94
      $region30: #{double_conv.5} parent=27 // pred_check_branch
        %201 = sbr.rel (%p199) target = $region32
      $region31: #{double_conv.5} parent=27 // pred_region
        _
      $region32: #{double_conv.5} parent=27 // pred_fallthru
        _
    $region28: #{double_conv.5} parent=5 // pred_fallthru
      _
    %p202 = scmp.le.s32.totalorder 2, %s8
    // Predicated region
    $region33: #{double_conv.5} parent=5 // pred_check
      %p203 = pneg %p202
    $region34: #{double_conv.5} parent=5 // pred_check_branch
      %205 = sbr.rel (%p203) target = $region36
    $region35: #{double_conv.5} parent=5 // pred_region
      %s206 = ssub.s32 %s8, 2
      // Predicated region
      $region37: #{double_conv.5} parent=35 // pred_check
        %p207 = pneg %p100
      $region38: #{double_conv.5} parent=35 // pred_check_branch
        %209 = sbr.rel (%p207) target = $region40
      $region39: #{double_conv.5} parent=35 // pred_region
        %p210 = scmp.lt.s32.totalorder %s19, 1
        %s211 = scalar_select %p210, %s19, 1
        %p212 = scmp.lt.s32.totalorder %s20, 1
        %s213 = scalar_select %p212, %s20, 1
        %s214 = smul.addr %s211, 2
        %s215 = sadd.s32 %s213, %s214
        %s216 = smul.addr %s215, 8
        %s217 = scalar_lea.vmem %s2, %s216
      $region40: #{double_conv.5} parent=35 // pred_fallthru
        _
    $region36: #{double_conv.5} parent=5 // pred_fallthru
      _
  $region6: #{double_conv.5} parent=0 // loop_footer
    %s12 = sadd.s32 1, %s8
  $region7: #{double_conv.5} parent=0 // loop_footer_branch
    %7 = sbr.rel target = $region3
  $region8: #{double_conv.5} parent=0 // loop_exit
    _

// kernel: double_conv.4
$region0: #{double_conv.4}
  #allocation0 [shape = 'u32[]', space=smem, size = 0x4, offset = 0x4, fixed_abs, tag = 'smem constant byte address 0x4 - core index']
  #allocation1 [shape = 'u32[144,128]{1,0:T(1,128)}', space=vmem, size = 0x12000, scoped, tag = 'internal scratch']
  #allocation2 [shape = 'bf16[8,512]{1,0:T(8,128)(2,1)}', space=vmem, size = 0x2000, scoped, tag = 'scratch operand']
  #allocation3 [shape = 'bf16[8,384]{1,0:T(8,128)(2,1)}', space=vmem, size = 0x1800, scoped, tag = 'scratch operand']
  #allocation4 [shape = 'bf16[72,128]{1,0:T(8,128)(2,1)}', space=vmem, size = 0x4800, scoped, tag = 'scratch operand']
  %s0 = inlined_call_operand.vmem [shape: bf16[2,8,256], index: 0, kind: input, shape index: {}]
  %s1 = inlined_call_operand.vmem [shape: bf16[8,72], index: 1, kind: input, shape index: {}]
  %s2 = inlined_call_operand.vmem [shape: f32[8,2], index: 2, kind: input, shape index: {}]
  %s3 = inlined_call_operand.vmem [shape: bf16[2,8,256], index: 3, kind: output, shape index: {0}]
  %s4 = inlined_call_operand.vmem [shape: f32[2,2,8,2], index: 4, kind: output, shape index: {1}]
  %5 = xla_tuple %s3, %s4
  %s6 = sld [smem:[#allocation0]]
  $region57: #{double_conv.4} parent=0
    _
  %s8 = ssub.s32 1, %s6
  %s9 = scalar_select 0, %s8, %s6
  loop: start=0, step=1, limit=6
  $region2: #{double_conv.4} parent=0 // loop_pre_header
    _
  $region3: #{double_conv.4} parent=0 // loop_header
    %s11 = sphi 0, %s15
    %p12 = scmp.ge.s32.totalorder %s11, 6
    %s18 = sphi 0, %s30
    %s19 = sphi 0, %s26
    %s20 = sphi 0, %s18
    %s21 = sphi 0, %s19
    %s22 = sphi 0, %s20
    %s23 = sphi 0, %s21
    %s33 = sphi 0, %s35
    %s36 = sphi 0, %s33
    %s37 = sphi 0, %s36
    %s53 = sphi 0, %s37
    %s57 = sphi 0, %s57
    %s59 = sphi 0, %s57
    %s60 = sphi 0, %s59
    %s74 = sphi 0, %s60
    %s78 = sphi 0, %s78
    %s80 = sphi 0, %s78
    %s81 = sphi 0, %s80
    %s95 = sphi 0, %s81
    %s103 = sphi 0, %s105
    %s106 = sphi 0, %s103
    %s107 = sphi 0, %s106
    %s123 = sphi 0, %s107
    %s131 = sphi 0, %s133
    %s134 = sphi 0, %s131
    %s135 = sphi 0, %s134
    %s151 = sphi 0, %s135
  $region4: #{double_conv.4} parent=0 // loop_header_branch
    %14 = sbr.rel (%p12) target = $region8
  $region5: #{double_conv.4} parent=0 // loop_body
    %s16 = ssub.s32 %s11, 1
    %s17 = ssub.s32 %s11, 2
    %s24 = sadd.s32 1, %s19
    %p25 = scmp.ge.s32.totalorder %s24, 2
    %s26 = scalar_select %p25, 0, %s24
    %s27 = sadd.s32 1, %s18
    %s28 = scalar_select %p25, %s27, %s18
    %p29 = scmp.ge.s32.totalorder %s28, 2
    %s30 = scalar_select %p29, 0, %s28
    %s31 = ssub.s32 %s18, %s30
    %p32 = scmp.eq.s32.totalorder %s31, 0
    %s34 = sadd.s32 %s33, 1
    %s35 = scalar_select %p32, %s33, %s34
    %p38 = pneg %p32
    %p39 = scmp.eq.s32.totalorder %s11, 3
    %p40 = por %p38, %p39
    %p41 = scmp.ne.s32.totalorder %s33, %s36
    %p42 = scmp.eq.s32.totalorder %s11, 0
    %p43 = por %p41, %p42
    %p44 = scmp.ne.s32.totalorder %s33, %s36
    %p45 = scmp.eq.s32.totalorder %s16, 3
    %p46 = por %p44, %p45
    %p47 = scmp.ne.s32.totalorder %s36, %s37
    %p48 = scmp.eq.s32.totalorder %s16, 0
    %p49 = por %p47, %p48
    %p50 = scmp.ne.s32.totalorder %s36, %s37
    %p51 = scmp.eq.s32.totalorder %s17, 3
    %p52 = por %p50, %p51
    %p54 = scmp.ne.s32.totalorder %s37, %s53
    %p55 = scmp.eq.s32.totalorder %s17, 0
    %p56 = por %p54, %p55
    %s58 = sadd.s32 %s57, 1
    %p61 = scmp.eq.s32.totalorder %s11, 3
    %p62 = scmp.ne.s32.totalorder %s57, %s59
    %p63 = scmp.eq.s32.totalorder %s11, 0
    %p64 = por %p62, %p63
    %p65 = scmp.ne.s32.totalorder %s57, %s59
    %p66 = scmp.eq.s32.totalorder %s16, 3
    %p67 = por %p65, %p66
    %p68 = scmp.ne.s32.totalorder %s59, %s60
    %p69 = scmp.eq.s32.totalorder %s16, 0
    %p70 = por %p68, %p69
    %p71 = scmp.ne.s32.totalorder %s59, %s60
    %p72 = scmp.eq.s32.totalorder %s17, 3
    %p73 = por %p71, %p72
    %p75 = scmp.ne.s32.totalorder %s60, %s74
    %p76 = scmp.eq.s32.totalorder %s17, 0
    %p77 = por %p75, %p76
    %s79 = sadd.s32 %s78, 1
    %p82 = scmp.eq.s32.totalorder %s11, 3
    %p83 = scmp.ne.s32.totalorder %s78, %s80
    %p84 = scmp.eq.s32.totalorder %s11, 0
    %p85 = por %p83, %p84
    %p86 = scmp.ne.s32.totalorder %s78, %s80
    %p87 = scmp.eq.s32.totalorder %s16, 3
    %p88 = por %p86, %p87
    %p89 = scmp.ne.s32.totalorder %s80, %s81
    %p90 = scmp.eq.s32.totalorder %s16, 0
    %p91 = por %p89, %p90
    %p92 = scmp.ne.s32.totalorder %s80, %s81
    %p93 = scmp.eq.s32.totalorder %s17, 3
    %p94 = por %p92, %p93
    %p96 = scmp.ne.s32.totalorder %s81, %s95
    %p97 = scmp.eq.s32.totalorder %s17, 0
    %p98 = por %p96, %p97
    %s99 = ssub.s32 %s18, %s30
    %s100 = ssub.s32 %s19, %s26
    %s101 = sor.u32 %s99, %s100
    %p102 = scmp.eq.s32.totalorder %s101, 0
    %s104 = sadd.s32 %s103, 1
    %s105 = scalar_select %p102, %s103, %s104
    %p108 = pneg %p102
    %p109 = scmp.eq.s32.totalorder %s11, 3
    %p110 = por %p108, %p109
    %p111 = scmp.ne.s32.totalorder %s103, %s106
    %p112 = scmp.eq.s32.totalorder %s11, 0
    %p113 = por %p111, %p112
    %p114 = scmp.ne.s32.totalorder %s103, %s106
    %p115 = scmp.eq.s32.totalorder %s16, 3
    %p116 = por %p114, %p115
    %p117 = scmp.ne.s32.totalorder %s106, %s107
    %p118 = scmp.eq.s32.totalorder %s16, 0
    %p119 = por %p117, %p118
    %p120 = scmp.ne.s32.totalorder %s106, %s107
    %p121 = scmp.eq.s32.totalorder %s17, 3
    %p122 = por %p120, %p121
    %p124 = scmp.ne.s32.totalorder %s107, %s123
    %p125 = scmp.eq.s32.totalorder %s17, 0
    %p126 = por %p124, %p125
    %s127 = ssub.s32 %s18, %s30
    %s128 = ssub.s32 %s19, %s26
    %s129 = sor.u32 %s127, %s128
    %p130 = scmp.eq.s32.totalorder %s129, 0
    %s132 = sadd.s32 %s131, 1
    %s133 = scalar_select %p130, %s131, %s132
    %p136 = pneg %p130
    %p137 = scmp.eq.s32.totalorder %s11, 3
    %p138 = por %p136, %p137
    %p139 = scmp.ne.s32.totalorder %s131, %s134
    %p140 = scmp.eq.s32.totalorder %s11, 0
    %p141 = por %p139, %p140
    %p142 = scmp.ne.s32.totalorder %s131, %s134
    %p143 = scmp.eq.s32.totalorder %s16, 3
    %p144 = por %p142, %p143
    %p145 = scmp.ne.s32.totalorder %s134, %s135
    %p146 = scmp.eq.s32.totalorder %s16, 0
    %p147 = por %p145, %p146
    %p148 = scmp.ne.s32.totalorder %s134, %s135
    %p149 = scmp.eq.s32.totalorder %s17, 3
    %p150 = por %p148, %p149
    %p152 = scmp.ne.s32.totalorder %s135, %s151
    %p153 = scmp.eq.s32.totalorder %s17, 0
    %p154 = por %p152, %p153
    %p155 = scmp.le.s32.totalorder 1, %s11
    %p156 = scmp.lt.s32.totalorder %s11, 5
    %p157 = pnand %p155, %p156
    %p158 = pneg %p157
    // Predicated region
    $region9: #{double_conv.4} parent=5 // pred_check
      _
    $region10: #{double_conv.4} parent=5 // pred_check_branch
      %160 = sbr.rel (%p157) target = $region12
    $region11: #{double_conv.4} parent=5 // pred_region
      %s161 = ssub.s32 %s11, 1
      // Predicated region
      $region13: #{double_conv.4} parent=11 // pred_check
        %p162 = pneg %p70
      $region14: #{double_conv.4} parent=11 // pred_check_branch
        %164 = sbr.rel (%p162) target = $region16
      $region15: #{double_conv.4} parent=11 // pred_region
        _
      $region16: #{double_conv.4} parent=11 // pred_fallthru
        _
      // Predicated region
      $region17: #{double_conv.4} parent=11 // pred_check
        %p165 = pneg %p91
      $region18: #{double_conv.4} parent=11 // pred_check_branch
        %167 = sbr.rel (%p165) target = $region20
      $region19: #{double_conv.4} parent=11 // pred_region
        _
      $region20: #{double_conv.4} parent=11 // pred_fallthru
        _
    $region12: #{double_conv.4} parent=5 // pred_fallthru
      _
    %p168 = scmp.lt.s32.totalorder %s11, 4
    // Predicated region
    $region21: #{double_conv.4} parent=5 // pred_check
      %p169 = pneg %p168
    $region22: #{double_conv.4} parent=5 // pred_check_branch
      %171 = sbr.rel (%p169) target = $region24
    $region23: #{double_conv.4} parent=5 // pred_region
      // Predicated region
      $region25: #{double_conv.4} parent=23 // pred_check
        %p172 = pneg %p43
      $region26: #{double_conv.4} parent=23 // pred_check_branch
        %174 = sbr.rel (%p172) target = $region28
      $region27: #{double_conv.4} parent=23 // pred_region
        %p175 = scmp.lt.s32.totalorder %s18, 1
        %s176 = scalar_select %p175, %s18, 1
        %s177 = smul.addr %s176, 2
        %s178 = smul.addr %s177, 4
        %s179 = scalar_lea.vmem %s0, %s178
      $region28: #{double_conv.4} parent=23 // pred_fallthru
        _
    $region24: #{double_conv.4} parent=5 // pred_fallthru
      _
    %p180 = scmp.le.s32.totalorder 1, %s11
    %p181 = scmp.lt.s32.totalorder %s11, 5
    %p182 = pnand %p180, %p181
    %p183 = pneg %p182
    // Predicated region
    $region29: #{double_conv.4} parent=5 // pred_check
      _
    $region30: #{double_conv.4} parent=5 // pred_check_branch
      %185 = sbr.rel (%p182) target = $region32
    $region31: #{double_conv.4} parent=5 // pred_region
      %s186 = ssub.s32 %s11, 1
      %p187 = scmp.lt.s32.totalorder %s20, 1
      %s188 = scalar_select %p187, %s20, 1
      %s189 = smul.addr %s188, 2
      %s190 = smul.addr %s189, 4
      %s191 = scalar_lea.vmem %s0, %s190
      %p192 = pneg %p49
      %p193 = pneg %p46
      %p194 = pneg %p70
      %p195 = pneg %p67
      %p196 = pneg %p91
      %p197 = pneg %p88
      %p198 = pneg %p119
      %p199 = pneg %p116
      %p200 = scmp.lt.s32.totalorder %s20, 1
      %s201 = scalar_select %p200, %s20, 1
      %p202 = scmp.lt.s32.totalorder %s21, 1
      %s203 = scalar_select %p202, %s21, 1
      %s204 = smul.addr %s201, 2
      %s205 = sadd.s32 %s203, %s204
      %s206 = smul.addr %s205, 4
      %s207 = scalar_lea.vmem %s3, %s206
      %p208 = pneg %p147
      %p209 = pneg %p144
      %p210 = scmp.lt.s32.totalorder %s20, 1
      %s211 = scalar_select %p210, %s20, 1
      %p212 = scmp.lt.s32.totalorder %s21, 1
      %s213 = scalar_select %p212, %s21, 1
      %s214 = smul.addr %s211, 2
      %s215 = sadd.s32 %s213, %s214
      %s216 = smul.addr %s215, 8
      %s217 = scalar_lea.vmem %s4, %s216
      %p218 = scmp.lt.s32.totalorder %s20, 1
      %s219 = scalar_select %p218, %s20, 1
      %s220 = smul.addr %s219, 2
      %s221 = smul.addr %s220, 4
      %s222 = scalar_lea.vmem %s0, %s221
      %p223 = scmp.lt.s32.totalorder %s20, 1
      %s224 = scalar_select %p223, %s20, 1
      %p225 = scmp.lt.s32.totalorder %s21, 1
      %s226 = scalar_select %p225, %s21, 1
      %s227 = smul.addr %s224, 2
      %s228 = sadd.s32 %s226, %s227
      %s229 = smul.addr %s228, 4
      %s230 = scalar_lea.vmem %s3, %s229
      %p231 = scmp.lt.s32.totalorder %s20, 1
      %s232 = scalar_select %p231, %s20, 1
      %p233 = scmp.lt.s32.totalorder %s21, 1
      %s234 = scalar_select %p233, %s21, 1
      %s235 = smul.addr %s232, 2
      %s236 = sadd.s32 %s234, %s235
      %s237 = smul.addr %s236, 8
      %s238 = scalar_lea.vmem %s4, %s237
      %p242 = scmp.eq.s32.totalorder %s21, 0
      // Predicated region
      $region33: #{double_conv.4} parent=31 // pred_check
        %p243 = pneg %p242
      $region34: #{double_conv.4} parent=31 // pred_check_branch
        %245 = sbr.rel (%p243) target = $region36
      $region35: #{double_conv.4} parent=31 // pred_region
        %v246 = vld [vmem:[%s222] sm:$0xff]
        %v247 = vunpack.c.l.bf16 %v246
        %v248 = vunpack.c.h.bf16 %v246
        %v249 = vld [vmem:[%s2] sm:$0xff]
        %251 = vset.pattern.permute.xlu0 0
        %252 = vperm.xlu0 %251, %v249
        %v253 = vpop.permute.xlu0 %252
        %v255 = vmul.f32 %v247, %v253
        %v256 = vmul.f32 %v248, %v253
        %257 = vset.pattern.permute.xlu0 1
        %258 = vperm.xlu0 %257, %v249
        %v259 = vpop.permute.xlu0 %258
        %v261 = vadd.f32 %v255, %v259
        %v262 = vadd.f32 %v256, %v259
        %v263 = vmax.f32 %v261, 0.0
        %v264 = vmax.f32 %v262, 0.0
        %265 = vst [vmem:[#allocation2] sm:$0xf] 0
        %v266 = vpack.c.bf16 %v263, %v263
        %v267 = vpack.c.bf16 %v264, %v264
        %v270 = vunpack.c.l.b16 %v266
        %v271 = vunpack.c.l.b16 %v267
        %v272 = vpack.c.b16 %v271, %v270
        %274 = vst [vmem:[#allocation2 + $0x4] sm:$0xff] %v272
        %275 = vst [vmem:[#allocation2 + $0xc] sm:$0xf] 0
      $region36: #{double_conv.4} parent=31 // pred_fallthru
        _
      %s276 = smul.u32 %s21, 128
      %s277 = sshra.s32 %s276, 7
      %s278 = sand.u32 %s276, 127
      %s279 = smul.addr %s277, 4
      %s280 = scalar_lea.vmem [#allocation2], %s279
      %v281 = vld [vmem:[%s280] sm:$0xff]
      %v282 = vld [vmem:[%s280 + $0x8] sm:$0xf]
      %283 = vst [vmem:[#allocation3] sm:$0xff] %v281
      %284 = vst [vmem:[#allocation3 + $0x8] sm:$0xf] %v282
      %v285 = vlaneseq
      %v286 = vand.u32 %v285, 127
      %vm287 = vcmp.lt.s32.totalorder %v286, 0
      %v288 = vsub.s32 0, %v286
      %v289 = vsel %vm287, %v288, %v286
      %v290 = vshrl.u32 %v289, 4
      %v291 = vand.u32 %v289, 15
      %v292 = vsub.s32 0, %v291
      %v293 = vsel %vm287, %v292, %v291
      %vm294 = vcmp.ne.s32.totalorder %v293, 0
      %vm295 = vcmp.lt.s32.totalorder %v293, 0
      %vm296 = vmand %vm295, %vm294
      %v297 = vadd.s32 %v293, 16
      %v298 = vsel %vm296, %v297, %v293
      %vm299 = vcmp.gt.s32.totalorder %v298, 0
      %vm300 = vcmp.lt.s32.totalorder %v298, 15
      %v301 = vld [vmem:[#allocation3] sm:$0xff]
      %v302 = vsel %vm299, 1, 0
      %vm303 = vcmp.eq.s32.totalorder %v302, 1
      %vm304 = vmpackc.low %vm303, %vm303
      %v305 = vsel %vm304, 65537, 0
      %306 = vrot.lane.b32.xlu0 %v305, 111
      %v307 = vpop.permute.xlu0 %306
      %v308 = vrot.slane %v307, 4
      %vm309 = vcmask 908288
      %v310 = vsel %vm309, %v308, %v307
      %vm311 = vcmp.ne.s16.totalorder %v310, 0
      %v312 = vsel %vm311, %v301, 0
      %314 = vrot.lane.b32.xlu0 %v312, 17
      %v315 = vpop.permute.xlu0 %314
      %v316 = vrot.slane %v315, 4
      %vm317 = vcmask 138240
      %v318 = vsel %vm317, %v315, %v316
      %320 = vst [vmem:[#allocation4] sm:$0xf] %v318
      %v321 = vld [vmem:[#allocation3] sm:$0xff]
      %323 = vrot.lane.b32.xlu0 %v321, 16
      %v324 = vpop.permute.xlu0 %323
      %v325 = vrot.slane %v324, 4
      %vm326 = vcmask 130048
      %v327 = vsel %vm326, %v324, %v325
      %329 = vst [vmem:[#allocation4 + $0x4] sm:$0xf] %v327
      %v330 = vld [vmem:[#allocation3] sm:$0xff]
      %v331 = vsel %vm300, 1, 0
      %vm332 = vcmp.eq.s32.totalorder %v331, 1
      %vm333 = vmpackc.low %vm332, %vm332
      %v334 = vsel %vm333, 65537, 0
      %335 = vrot.lane.b32.xlu0 %v334, 113
      %v336 = vpop.permute.xlu0 %335
      %v337 = vrot.slane %v336, 4
      %vm338 = vcmask 924672
      %v339 = vsel %vm338, %v337, %v336
      %vm340 = vcmp.ne.s16.totalorder %v339, 0
      %v341 = vsel %vm340, %v330, 0
      %343 = vrot.lane.b32.xlu0 %v341, 15
      %v344 = vpop.permute.xlu0 %343
      %v345 = vrot.slane %v344, 4
      %vm346 = vcmask 121856
      %v347 = vsel %vm346, %v344, %v345
      %349 = vst [vmem:[#allocation4 + $0x8] sm:$0xf] %v347
      %v350 = vld [vmem:[#allocation3] sm:$0xff]
      %351 = vrot.lane.b32.xlu0 %v305, 127
      %v352 = vpop.permute.xlu0 %351
      %v353 = vrot.slane %v352, 4
      %vm354 = vcmask 1039360
      %v355 = vsel %vm354, %v353, %v352
      %vm356 = vcmp.ne.s16.totalorder %v355, 0
      %v357 = vsel %vm356, %v350, 0
      %359 = vrot.lane.b32.xlu0 %v357, 1
      %v360 = vpop.permute.xlu0 %359
      %v361 = vrot.slane %v360, 4
      %vm362 = vcmask 7168
      %v363 = vsel %vm362, %v360, %v361
      %365 = vst [vmem:[#allocation4 + $0xc] sm:$0xf] %v363
      %v366 = vld [vmem:[#allocation3 + $0x4] sm:$0xf]
      %367 = vst [vmem:[#allocation4 + $0x10] sm:$0xf] %v366
      %v368 = vld [vmem:[#allocation3 + $0x4] sm:$0xff]
      %369 = vrot.lane.b32.xlu0 %v334, 1
      %v370 = vpop.permute.xlu0 %369
      %v371 = vrot.slane %v370, 4
      %v372 = vsel %vm362, %v371, %v370
      %vm373 = vcmp.ne.s16.totalorder %v372, 0
      %v374 = vsel %vm373, %v368, 0
      %376 = vrot.lane.b32.xlu0 %v374, 127
      %v377 = vpop.permute.xlu0 %376
      %v378 = vrot.slane %v377, 4
      %v379 = vsel %vm354, %v377, %v378
      %381 = vst [vmem:[#allocation4 + $0x14] sm:$0xf] %v379
      %v382 = vld [vmem:[#allocation3 + $0x4] sm:$0xff]
      %383 = vrot.lane.b32.xlu0 %v305, 15
      %v384 = vpop.permute.xlu0 %383
      %v385 = vrot.slane %v384, 4
      %v386 = vsel %vm346, %v385, %v384
      %vm387 = vcmp.ne.s16.totalorder %v386, 0
      %v388 = vsel %vm387, %v382, 0
      %390 = vrot.lane.b32.xlu0 %v388, 113
      %v391 = vpop.permute.xlu0 %390
      %v392 = vrot.slane %v391, 4
      %v393 = vsel %vm338, %v391, %v392
      %395 = vst [vmem:[#allocation4 + $0x18] sm:$0xf] %v393
      %v396 = vld [vmem:[#allocation3 + $0x4] sm:$0xff]
      %398 = vrot.lane.b32.xlu0 %v396, 112
      %v399 = vpop.permute.xlu0 %398
      %v400 = vrot.slane %v399, 4
      %vm401 = vcmask 916480
      %v402 = vsel %vm401, %v399, %v400
      %404 = vst [vmem:[#allocation4 + $0x1c] sm:$0xf] %v402
      %v405 = vld [vmem:[#allocation3 + $0x4] sm:$0xff]
      %406 = vrot.lane.b32.xlu0 %v334, 17
      %v407 = vpop.permute.xlu0 %406
      %v408 = vrot.slane %v407, 4
      %v409 = vsel %vm317, %v408, %v407
      %vm410 = vcmp.ne.s16.totalorder %v409, 0
      %v411 = vsel %vm410, %v405, 0
      %413 = vrot.lane.b32.xlu0 %v411, 111
      %v414 = vpop.permute.xlu0 %413
      %v415 = vrot.slane %v414, 4
      %v416 = vsel %vm309, %v414, %v415
      %418 = vst [vmem:[#allocation4 + $0x20] sm:$0xf] %v416
      %v419 = vld [vmem:[%s1] sm:$0xf]
      %v420 = vld [vmem:[#allocation4] sm:$0xf]
      %v421 = vld [vmem:[#allocation4 + $0x4] sm:$0xf]
      %v422 = vld [vmem:[#allocation4 + $0x8] sm:$0xf]
      %v423 = vld [vmem:[#allocation4 + $0xc] sm:$0xf]
      %v424 = vld [vmem:[#allocation4 + $0x10] sm:$0xf]
      %v425 = vld [vmem:[#allocation4 + $0x14] sm:$0xf]
      %v426 = vld [vmem:[#allocation4 + $0x18] sm:$0xf]
      %v427 = vld [vmem:[#allocation4 + $0x1c] sm:$0xf]
      %v428 = vld [vmem:[#allocation4 + $0x20] sm:$0xf]
      %v438 = vunpack.c.l.b16 %v420
      %v439 = vunpack.c.l.b16 %v421
      %v440 = vunpack.c.l.b16 %v422
      %v441 = vunpack.c.l.b16 %v423
      %v442 = vunpack.c.l.b16 %v424
      %v443 = vunpack.c.l.b16 %v425
      %v444 = vunpack.c.l.b16 %v426
      %v445 = vunpack.c.l.b16 %v427
      %v446 = vunpack.c.l.b16 %v428
      %v447 = vpack.c.b16 %v439, %v438
      %v448 = vpack.c.b16 %v441, %v440
      %v449 = vpack.c.b16 %v443, %v442
      %v450 = vpack.c.b16 %v445, %v444
      %v451 = vpack.c.b16 %v446, %v446
      %vm456 = vcmask 588800
      %v458 = vsel %vm456, %v419, 0
      %vm460 = vcmask 1043456
      %v462 = vsel %vm460, %v451, 0
      %464 = vmatprep.subr.bf16.mxu0 0
      %465 = vmatpush1.bf16.msra.mxu0 0
      %466 = vmatprep.subr.bf16.mxu0 0
      %467 = vmatpush1.bf16.msra.mxu0 0
      %468 = vmatprep.subr.bf16.mxu0 0
      %469 = vmatpush1.bf16.msra.mxu0 0
      %470 = vmatprep.subr.bf16.mxu0 0
      %471 = vmatpush1.bf16.msra.mxu0 %v462
      %472 = vmatprep.subr.bf16.mxu0 0
      %473 = vmatpush1.bf16.msra.mxu0 %v450
      %474 = vmatprep.subr.bf16.mxu0 0
      %475 = vmatpush1.bf16.msra.mxu0 %v449
      %476 = vmatprep.subr.bf16.mxu0 0
      %477 = vmatpush1.bf16.msra.mxu0 %v448
      %478 = vmatprep.subr.bf16.mxu0 0
      %479 = vmatpush1.bf16.msra.mxu0 %v447
      %480 = vmatprep.subr.bf16.mxu0 0
      %481 = vmatpush2.bf16.msra.mxu0 0
      %482 = vmatprep.subr.bf16.mxu0 0
      %483 = vmatpush2.bf16.msra.mxu0 0
      %484 = vmatprep.subr.bf16.mxu0 0
      %485 = vmatpush2.bf16.msra.mxu0 0
      %486 = vmatprep.subr.bf16.mxu0 0
      %487 = vmatpush2.bf16.msra.mxu0 0
      %488 = vmatprep.subr.bf16.mxu0 0
      %489 = vmatpush2.bf16.msra.mxu0 0
      %490 = vmatprep.subr.bf16.mxu0 0
      %491 = vmatpush2.bf16.msra.mxu0 0
      %492 = vmatprep.subr.bf16.mxu0 0
      %493 = vmatpush2.bf16.msra.mxu0 0
      %494 = vmatprep.subr.bf16.mxu0 0
      %495 = vmatpush2.bf16.msra.mxu0 0
      %496 = vmatprep.mubr.bf16.mxu0 0
      %497 = vmatmul.mubr.bf16.gmra.mxu0 %v458
      %v498 = vpop.f32.mrf.mxu0
      %v499 = vadd.f32 0.0, %v498
      %v500 = vpop.f32.mrf.mxu0
      %v501 = vpop.f32.mrf.mxu0
      %v502 = vpop.f32.mrf.mxu0
      %503 = vdwg.mxu0
      %v504 = vpack.c.bf16 %v499, %v499
      %505 = vst [vmem:[%s230] sm:$0xf] %v504
      %506 = vadd.xlane.f32.xlu0 %v499
      %v507 = vpop.xlane.xlu0 %506
      %v508 = vmul.f32 %v507, 0.0078125
      %v509 = vsub.f32 %v499, %v508
      %v510 = vmul.f32 %v509, %v509
      %511 = vadd.xlane.f32.xlu0 %v510
      %v512 = vpop.xlane.xlu0 %511
      %vm513 = vcmask 7168
      %v514 = vsel %vm513, %v507, %v512
      %vm515 = vcmask 15360
      %516 = vst.msk [vmem:[%s238] sm:$0xff] %vm515, %v514
      %p517 = scmp.lt.s32.totalorder %s20, 1
      %s518 = scalar_select %p517, %s20, 1
      %p519 = scmp.lt.s32.totalorder %s21, 1
      %s520 = scalar_select %p519, %s21, 1
      %s521 = smul.addr %s518, 2
      %s522 = sadd.s32 %s520, %s521
      %s523 = smul.addr %s522, 4
      %s524 = scalar_lea.vmem %s3, %s523
      %p525 = scmp.lt.s32.totalorder %s20, 1
      %s526 = scalar_select %p525, %s20, 1
      %p527 = scmp.lt.s32.totalorder %s21, 1
      %s528 = scalar_select %p527, %s21, 1
      %s529 = smul.addr %s526, 2
      %s530 = sadd.s32 %s528, %s529
      %s531 = smul.addr %s530, 8
      %s532 = scalar_lea.vmem %s4, %s531
      // Predicated region
      $region37: #{double_conv.4} parent=31 // pred_check
        %p533 = pneg %p116
      $region38: #{double_conv.4} parent=31 // pred_check_branch
        %535 = sbr.rel (%p533) target = $region40
      $region39: #{double_conv.4} parent=31 // pred_region
        _
      $region40: #{double_conv.4} parent=31 // pred_fallthru
        _
      // Predicated region
      $region41: #{double_conv.4} parent=31 // pred_check
        %p536 = pneg %p144
      $region42: #{double_conv.4} parent=31 // pred_check_branch
        %538 = sbr.rel (%p536) target = $region44
      $region43: #{double_conv.4} parent=31 // pred_region
        _
      $region44: #{double_conv.4} parent=31 // pred_fallthru
        _
    $region32: #{double_conv.4} parent=5 // pred_fallthru
      _
    %p539 = scmp.le.s32.totalorder 2, %s11
    // Predicated region
    $region45: #{double_conv.4} parent=5 // pred_check
      %p540 = pneg %p539
    $region46: #{double_conv.4} parent=5 // pred_check_branch
      %542 = sbr.rel (%p540) target = $region48
    $region47: #{double_conv.4} parent=5 // pred_region
      %s543 = ssub.s32 %s11, 2
      // Predicated region
      $region49: #{double_conv.4} parent=47 // pred_check
        %p544 = pneg %p122
      $region50: #{double_conv.4} parent=47 // pred_check_branch
        %546 = sbr.rel (%p544) target = $region52
      $region51: #{double_conv.4} parent=47 // pred_region
        %p547 = scmp.lt.s32.totalorder %s22, 1
        %s548 = scalar_select %p547, %s22, 1
        %p549 = scmp.lt.s32.totalorder %s23, 1
        %s550 = scalar_select %p549, %s23, 1
        %s551 = smul.addr %s548, 2
        %s552 = sadd.s32 %s550, %s551
        %s553 = smul.addr %s552, 4
        %s554 = scalar_lea.vmem %s3, %s553
      $region52: #{double_conv.4} parent=47 // pred_fallthru
        _
      // Predicated region
      $region53: #{double_conv.4} parent=47 // pred_check
        %p555 = pneg %p150
      $region54: #{double_conv.4} parent=47 // pred_check_branch
        %557 = sbr.rel (%p555) target = $region56
      $region55: #{double_conv.4} parent=47 // pred_region
        %p558 = scmp.lt.s32.totalorder %s22, 1
        %s559 = scalar_select %p558, %s22, 1
        %p560 = scmp.lt.s32.totalorder %s23, 1
        %s561 = scalar_select %p560, %s23, 1
        %s562 = smul.addr %s559, 2
        %s563 = sadd.s32 %s561, %s562
        %s564 = smul.addr %s563, 8
        %s565 = scalar_lea.vmem %s4, %s564
      $region56: #{double_conv.4} parent=47 // pred_fallthru
        _
    $region48: #{double_conv.4} parent=5 // pred_fallthru
      _
  $region6: #{double_conv.4} parent=0 // loop_footer
    %s15 = sadd.s32 1, %s11
  $region7: #{double_conv.4} parent=0 // loop_footer_branch
    %10 = sbr.rel target = $region3
  $region8: #{double_conv.4} parent=0 // loop_exit
    _

// kernel: double_conv.3
$region0: #{double_conv.3}
  #allocation0 [shape = 'u32[]', space=smem, size = 0x4, offset = 0x4, fixed_abs, tag = 'smem constant byte address 0x4 - core index']
  #allocation1 [shape = 'u32[144,128]{1,0:T(1,128)}', space=vmem, size = 0x12000, scoped, tag = 'internal scratch']
  #allocation2 [shape = 'bf16[4,512]{1,0:T(4,128)(2,1)}', space=vmem, size = 0x1000, scoped, tag = 'scratch operand']
  #allocation3 [shape = 'bf16[4,384]{1,0:T(4,128)(2,1)}', space=vmem, size = 0xc00, scoped, tag = 'scratch operand']
  #allocation4 [shape = 'bf16[36,128]{1,0:T(8,128)(2,1)}', space=vmem, size = 0x2800, scoped, tag = 'scratch operand']
  %s0 = inlined_call_operand.vmem [shape: f32[2,4,256], index: 0, kind: input, shape index: {}]
  %s1 = inlined_call_operand.vmem [shape: bf16[8,36], index: 1, kind: input, shape index: {}]
  %s2 = inlined_call_operand.vmem [shape: f32[4,2], index: 2, kind: input, shape index: {}]
  %s3 = inlined_call_operand.vmem [shape: bf16[2,8,256], index: 3, kind: output, shape index: {0}]
  %s4 = inlined_call_operand.vmem [shape: f32[2,2,8,2], index: 4, kind: output, shape index: {1}]
  %5 = xla_tuple %s3, %s4
  %s6 = sld [smem:[#allocation0]]
  $region57: #{double_conv.3} parent=0
    _
  %s8 = ssub.s32 1, %s6
  %s9 = scalar_select 0, %s8, %s6
  loop: start=0, step=1, limit=6
  $region2: #{double_conv.3} parent=0 // loop_pre_header
    _
  $region3: #{double_conv.3} parent=0 // loop_header
    %s11 = sphi 0, %s15
    %p12 = scmp.ge.s32.totalorder %s11, 6
    %s18 = sphi 0, %s30
    %s19 = sphi 0, %s26
    %s20 = sphi 0, %s18
    %s21 = sphi 0, %s19
    %s22 = sphi 0, %s20
    %s23 = sphi 0, %s21
    %s33 = sphi 0, %s35
    %s36 = sphi 0, %s33
    %s37 = sphi 0, %s36
    %s53 = sphi 0, %s37
    %s57 = sphi 0, %s57
    %s59 = sphi 0, %s57
    %s60 = sphi 0, %s59
    %s74 = sphi 0, %s60
    %s78 = sphi 0, %s78
    %s80 = sphi 0, %s78
    %s81 = sphi 0, %s80
    %s95 = sphi 0, %s81
    %s103 = sphi 0, %s105
    %s106 = sphi 0, %s103
    %s107 = sphi 0, %s106
    %s123 = sphi 0, %s107
    %s131 = sphi 0, %s133
    %s134 = sphi 0, %s131
    %s135 = sphi 0, %s134
    %s151 = sphi 0, %s135
  $region4: #{double_conv.3} parent=0 // loop_header_branch
    %14 = sbr.rel (%p12) target = $region8
  $region5: #{double_conv.3} parent=0 // loop_body
    %s16 = ssub.s32 %s11, 1
    %s17 = ssub.s32 %s11, 2
    %s24 = sadd.s32 1, %s19
    %p25 = scmp.ge.s32.totalorder %s24, 2
    %s26 = scalar_select %p25, 0, %s24
    %s27 = sadd.s32 1, %s18
    %s28 = scalar_select %p25, %s27, %s18
    %p29 = scmp.ge.s32.totalorder %s28, 2
    %s30 = scalar_select %p29, 0, %s28
    %s31 = ssub.s32 %s18, %s30
    %p32 = scmp.eq.s32.totalorder %s31, 0
    %s34 = sadd.s32 %s33, 1
    %s35 = scalar_select %p32, %s33, %s34
    %p38 = pneg %p32
    %p39 = scmp.eq.s32.totalorder %s11, 3
    %p40 = por %p38, %p39
    %p41 = scmp.ne.s32.totalorder %s33, %s36
    %p42 = scmp.eq.s32.totalorder %s11, 0
    %p43 = por %p41, %p42
    %p44 = scmp.ne.s32.totalorder %s33, %s36
    %p45 = scmp.eq.s32.totalorder %s16, 3
    %p46 = por %p44, %p45
    %p47 = scmp.ne.s32.totalorder %s36, %s37
    %p48 = scmp.eq.s32.totalorder %s16, 0
    %p49 = por %p47, %p48
    %p50 = scmp.ne.s32.totalorder %s36, %s37
    %p51 = scmp.eq.s32.totalorder %s17, 3
    %p52 = por %p50, %p51
    %p54 = scmp.ne.s32.totalorder %s37, %s53
    %p55 = scmp.eq.s32.totalorder %s17, 0
    %p56 = por %p54, %p55
    %s58 = sadd.s32 %s57, 1
    %p61 = scmp.eq.s32.totalorder %s11, 3
    %p62 = scmp.ne.s32.totalorder %s57, %s59
    %p63 = scmp.eq.s32.totalorder %s11, 0
    %p64 = por %p62, %p63
    %p65 = scmp.ne.s32.totalorder %s57, %s59
    %p66 = scmp.eq.s32.totalorder %s16, 3
    %p67 = por %p65, %p66
    %p68 = scmp.ne.s32.totalorder %s59, %s60
    %p69 = scmp.eq.s32.totalorder %s16, 0
    %p70 = por %p68, %p69
    %p71 = scmp.ne.s32.totalorder %s59, %s60
    %p72 = scmp.eq.s32.totalorder %s17, 3
    %p73 = por %p71, %p72
    %p75 = scmp.ne.s32.totalorder %s60, %s74
    %p76 = scmp.eq.s32.totalorder %s17, 0
    %p77 = por %p75, %p76
    %s79 = sadd.s32 %s78, 1
    %p82 = scmp.eq.s32.totalorder %s11, 3
    %p83 = scmp.ne.s32.totalorder %s78, %s80
    %p84 = scmp.eq.s32.totalorder %s11, 0
    %p85 = por %p83, %p84
    %p86 = scmp.ne.s32.totalorder %s78, %s80
    %p87 = scmp.eq.s32.totalorder %s16, 3
    %p88 = por %p86, %p87
    %p89 = scmp.ne.s32.totalorder %s80, %s81
    %p90 = scmp.eq.s32.totalorder %s16, 0
    %p91 = por %p89, %p90
    %p92 = scmp.ne.s32.totalorder %s80, %s81
    %p93 = scmp.eq.s32.totalorder %s17, 3
    %p94 = por %p92, %p93
    %p96 = scmp.ne.s32.totalorder %s81, %s95
    %p97 = scmp.eq.s32.totalorder %s17, 0
    %p98 = por %p96, %p97
    %s99 = ssub.s32 %s18, %s30
    %s100 = ssub.s32 %s19, %s26
    %s101 = sor.u32 %s99, %s100
    %p102 = scmp.eq.s32.totalorder %s101, 0
    %s104 = sadd.s32 %s103, 1
    %s105 = scalar_select %p102, %s103, %s104
    %p108 = pneg %p102
    %p109 = scmp.eq.s32.totalorder %s11, 3
    %p110 = por %p108, %p109
    %p111 = scmp.ne.s32.totalorder %s103, %s106
    %p112 = scmp.eq.s32.totalorder %s11, 0
    %p113 = por %p111, %p112
    %p114 = scmp.ne.s32.totalorder %s103, %s106
    %p115 = scmp.eq.s32.totalorder %s16, 3
    %p116 = por %p114, %p115
    %p117 = scmp.ne.s32.totalorder %s106, %s107
    %p118 = scmp.eq.s32.totalorder %s16, 0
    %p119 = por %p117, %p118
    %p120 = scmp.ne.s32.totalorder %s106, %s107
    %p121 = scmp.eq.s32.totalorder %s17, 3
    %p122 = por %p120, %p121
    %p124 = scmp.ne.s32.totalorder %s107, %s123
    %p125 = scmp.eq.s32.totalorder %s17, 0
    %p126 = por %p124, %p125
    %s127 = ssub.s32 %s18, %s30
    %s128 = ssub.s32 %s19, %s26
    %s129 = sor.u32 %s127, %s128
    %p130 = scmp.eq.s32.totalorder %s129, 0
    %s132 = sadd.s32 %s131, 1
    %s133 = scalar_select %p130, %s131, %s132
    %p136 = pneg %p130
    %p137 = scmp.eq.s32.totalorder %s11, 3
    %p138 = por %p136, %p137
    %p139 = scmp.ne.s32.totalorder %s131, %s134
    %p140 = scmp.eq.s32.totalorder %s11, 0
    %p141 = por %p139, %p140
    %p142 = scmp.ne.s32.totalorder %s131, %s134
    %p143 = scmp.eq.s32.totalorder %s16, 3
    %p144 = por %p142, %p143
    %p145 = scmp.ne.s32.totalorder %s134, %s135
    %p146 = scmp.eq.s32.totalorder %s16, 0
    %p147 = por %p145, %p146
    %p148 = scmp.ne.s32.totalorder %s134, %s135
    %p149 = scmp.eq.s32.totalorder %s17, 3
    %p150 = por %p148, %p149
    %p152 = scmp.ne.s32.totalorder %s135, %s151
    %p153 = scmp.eq.s32.totalorder %s17, 0
    %p154 = por %p152, %p153
    %p155 = scmp.le.s32.totalorder 1, %s11
    %p156 = scmp.lt.s32.totalorder %s11, 5
    %p157 = pnand %p155, %p156
    %p158 = pneg %p157
    // Predicated region
    $region9: #{double_conv.3} parent=5 // pred_check
      _
    $region10: #{double_conv.3} parent=5 // pred_check_branch
      %160 = sbr.rel (%p157) target = $region12
    $region11: #{double_conv.3} parent=5 // pred_region
      %s161 = ssub.s32 %s11, 1
      // Predicated region
      $region13: #{double_conv.3} parent=11 // pred_check
        %p162 = pneg %p70
      $region14: #{double_conv.3} parent=11 // pred_check_branch
        %164 = sbr.rel (%p162) target = $region16
      $region15: #{double_conv.3} parent=11 // pred_region
        _
      $region16: #{double_conv.3} parent=11 // pred_fallthru
        _
      // Predicated region
      $region17: #{double_conv.3} parent=11 // pred_check
        %p165 = pneg %p91
      $region18: #{double_conv.3} parent=11 // pred_check_branch
        %167 = sbr.rel (%p165) target = $region20
      $region19: #{double_conv.3} parent=11 // pred_region
        _
      $region20: #{double_conv.3} parent=11 // pred_fallthru
        _
    $region12: #{double_conv.3} parent=5 // pred_fallthru
      _
    %p168 = scmp.lt.s32.totalorder %s11, 4
    // Predicated region
    $region21: #{double_conv.3} parent=5 // pred_check
      %p169 = pneg %p168
    $region22: #{double_conv.3} parent=5 // pred_check_branch
      %171 = sbr.rel (%p169) target = $region24
    $region23: #{double_conv.3} parent=5 // pred_region
      // Predicated region
      $region25: #{double_conv.3} parent=23 // pred_check
        %p172 = pneg %p43
      $region26: #{double_conv.3} parent=23 // pred_check_branch
        %174 = sbr.rel (%p172) target = $region28
      $region27: #{double_conv.3} parent=23 // pred_region
        %p175 = scmp.lt.s32.totalorder %s18, 1
        %s176 = scalar_select %p175, %s18, 1
        %s177 = smul.addr %s176, 2
        %s178 = smul.addr %s177, 4
        %s179 = scalar_lea.vmem %s0, %s178
      $region28: #{double_conv.3} parent=23 // pred_fallthru
        _
    $region24: #{double_conv.3} parent=5 // pred_fallthru
      _
    %p180 = scmp.le.s32.totalorder 1, %s11
    %p181 = scmp.lt.s32.totalorder %s11, 5
    %p182 = pnand %p180, %p181
    %p183 = pneg %p182
    // Predicated region
    $region29: #{double_conv.3} parent=5 // pred_check
      _
    $region30: #{double_conv.3} parent=5 // pred_check_branch
      %185 = sbr.rel (%p182) target = $region32
    $region31: #{double_conv.3} parent=5 // pred_region
      %s186 = ssub.s32 %s11, 1
      %p187 = scmp.lt.s32.totalorder %s20, 1
      %s188 = scalar_select %p187, %s20, 1
      %s189 = smul.addr %s188, 2
      %s190 = smul.addr %s189, 4
      %s191 = scalar_lea.vmem %s0, %s190
      %p192 = pneg %p49
      %p193 = pneg %p46
      %p194 = pneg %p70
      %p195 = pneg %p67
      %p196 = pneg %p91
      %p197 = pneg %p88
      %p198 = pneg %p119
      %p199 = pneg %p116
      %p200 = scmp.lt.s32.totalorder %s20, 1
      %s201 = scalar_select %p200, %s20, 1
      %p202 = scmp.lt.s32.totalorder %s21, 1
      %s203 = scalar_select %p202, %s21, 1
      %s204 = smul.addr %s201, 2
      %s205 = sadd.s32 %s203, %s204
      %s206 = smul.addr %s205, 4
      %s207 = scalar_lea.vmem %s3, %s206
      %p208 = pneg %p147
      %p209 = pneg %p144
      %p210 = scmp.lt.s32.totalorder %s20, 1
      %s211 = scalar_select %p210, %s20, 1
      %p212 = scmp.lt.s32.totalorder %s21, 1
      %s213 = scalar_select %p212, %s21, 1
      %s214 = smul.addr %s211, 2
      %s215 = sadd.s32 %s213, %s214
      %s216 = smul.addr %s215, 8
      %s217 = scalar_lea.vmem %s4, %s216
      %p218 = scmp.lt.s32.totalorder %s20, 1
      %s219 = scalar_select %p218, %s20, 1
      %s220 = smul.addr %s219, 2
      %s221 = smul.addr %s220, 4
      %s222 = scalar_lea.vmem %s0, %s221
      %p223 = scmp.lt.s32.totalorder %s20, 1
      %s224 = scalar_select %p223, %s20, 1
      %p225 = scmp.lt.s32.totalorder %s21, 1
      %s226 = scalar_select %p225, %s21, 1
      %s227 = smul.addr %s224, 2
      %s228 = sadd.s32 %s226, %s227
      %s229 = smul.addr %s228, 4
      %s230 = scalar_lea.vmem %s3, %s229
      %p231 = scmp.lt.s32.totalorder %s20, 1
      %s232 = scalar_select %p231, %s20, 1
      %p233 = scmp.lt.s32.totalorder %s21, 1
      %s234 = scalar_select %p233, %s21, 1
      %s235 = smul.addr %s232, 2
      %s236 = sadd.s32 %s234, %s235
      %s237 = smul.addr %s236, 8
      %s238 = scalar_lea.vmem %s4, %s237
      %p242 = scmp.eq.s32.totalorder %s21, 0
      // Predicated region
      $region33: #{double_conv.3} parent=31 // pred_check
        %p243 = pneg %p242
      $region34: #{double_conv.3} parent=31 // pred_check_branch
        %245 = sbr.rel (%p243) target = $region36
      $region35: #{double_conv.3} parent=31 // pred_region
        %v246 = vld [vmem:[%s222] sm:$0xff]
        %247 = vst [vmem:[#allocation2] sm:$0x3] 0
        %v249 = vcombine.high %v246, %v246
        %v251 = vpack.c.bf16 %v246, %v246
        %v252 = vpack.c.bf16 %v249, %v249
        %v255 = vcombine.low %v251, %v252
        %v257 = vunpack.c.l.s4 1983009808
        %v258 = vunpack.c.0.s8 %v257
        %v259 = vlaneseq
        %v260 = vshrl.u32 %v259, 7
        %v261 = vsub.s32 %v258, %v260
        %v262 = vrot.slane %v255, %v261
        %264 = vst [vmem:[#allocation2 + $0x2] sm:$0xf] %v262
        %265 = vst [vmem:[#allocation2 + $0x6] sm:$0x3] 0
      $region36: #{double_conv.3} parent=31 // pred_fallthru
        _
      %s266 = smul.u32 %s21, 128
      %s267 = sshra.s32 %s266, 7
      %s268 = sand.u32 %s266, 127
      %s269 = smul.addr %s267, 2
      %s270 = scalar_lea.vmem [#allocation2], %s269
      %v271 = vld [vmem:[%s270] sm:$0x3f]
      %272 = vst [vmem:[#allocation3] sm:$0x3f] %v271
      %v273 = vlaneseq
      %v274 = vand.u32 %v273, 127
      %vm275 = vcmp.lt.s32.totalorder %v274, 0
      %v276 = vsub.s32 0, %v274
      %v277 = vsel %vm275, %v276, %v274
      %v278 = vshrl.u32 %v277, 4
      %v279 = vand.u32 %v277, 15
      %v280 = vsub.s32 0, %v279
      %v281 = vsel %vm275, %v280, %v279
      %vm282 = vcmp.ne.s32.totalorder %v281, 0
      %vm283 = vcmp.lt.s32.totalorder %v281, 0
      %vm284 = vmand %vm283, %vm282
      %v285 = vadd.s32 %v281, 16
      %v286 = vsel %vm284, %v285, %v281
      %vm287 = vcmp.gt.s32.totalorder %v286, 0
      %vm288 = vcmp.lt.s32.totalorder %v286, 15
      %v289 = vld [vmem:[#allocation3] sm:$0xf]
      %v290 = vsel %vm287, 1, 0
      %vm291 = vcmp.eq.s32.totalorder %v290, 1
      %v292 = vsel %vm291, 1, 0
      %v293 = vpack.c.b16 %v292, %v292
      %vm294 = vcmp.ne.s16.totalorder %v293, 0
      %v295 = vsel %vm294, 65537, 0
      %296 = vrot.lane.b32.xlu0 %v295, 111
      %v297 = vpop.permute.xlu0 %296
      %v298 = vrot.slane %v297, 6
      %vm299 = vcmask 908288
      %v300 = vsel %vm299, %v298, %v297
      %vm301 = vcmp.ne.s16.totalorder %v300, 0
      %v302 = vsel %vm301, %v289, 0
      %v305 = vunpack.c.l.s4 1983009808
      %v306 = vunpack.c.0.s8 %v305
      %v307 = vlaneseq
      %v308 = vshrl.u32 %v307, 7
      %v309 = vsub.s32 %v306, %v308
      %v310 = vrot.slane %v302, %v309
      %311 = vrot.lane.b32.xlu0 %v310, 17
      %v312 = vpop.permute.xlu0 %311
      %v313 = vrot.slane %v312, 4
      %vm314 = vcmask 138240
      %v315 = vsel %vm314, %v312, %v313
      %317 = vst [vmem:[#allocation4] sm:$0x3] %v315
      %v318 = vld [vmem:[#allocation3] sm:$0xf]
      %v320 = vcombine.low %v318, %v318
      %v322 = vunpack.c.l.s4 1983009808
      %v323 = vunpack.c.0.s8 %v322
      %v324 = vlaneseq
      %v325 = vshrl.u32 %v324, 7
      %v326 = vsub.s32 %v323, %v325
      %v327 = vrot.slane %v320, %v326
      %328 = vrot.lane.b32.xlu0 %v327, 16
      %v329 = vpop.permute.xlu0 %328
      %v330 = vrot.slane %v329, 4
      %vm331 = vcmask 130048
      %v332 = vsel %vm331, %v329, %v330
      %334 = vst [vmem:[#allocation4] sm:$0xc] %v332
      %v335 = vld [vmem:[#allocation3] sm:$0xf]
      %v336 = vsel %vm288, 1, 0
      %vm337 = vcmp.eq.s32.totalorder %v336, 1
      %v338 = vsel %vm337, 1, 0
      %v339 = vpack.c.b16 %v338, %v338
      %vm340 = vcmp.ne.s16.totalorder %v339, 0
      %v341 = vsel %vm340, 65537, 0
      %342 = vrot.lane.b32.xlu0 %v341, 113
      %v343 = vpop.permute.xlu0 %342
      %v344 = vrot.slane %v343, 6
      %vm345 = vcmask 924672
      %v346 = vsel %vm345, %v344, %v343
      %vm347 = vcmp.ne.s16.totalorder %v346, 0
      %v348 = vsel %vm347, %v335, 0
      %v351 = vunpack.c.l.s4 1983009808
      %v352 = vunpack.c.0.s8 %v351
      %v353 = vlaneseq
      %v354 = vshrl.u32 %v353, 7
      %v355 = vsub.s32 %v352, %v354
      %v356 = vrot.slane %v348, %v355
      %357 = vrot.lane.b32.xlu0 %v356, 15
      %v358 = vpop.permute.xlu0 %357
      %v359 = vrot.slane %v358, 4
      %vm360 = vcmask 121856
      %v361 = vsel %vm360, %v358, %v359
      %363 = vst [vmem:[#allocation4 + $0x4] sm:$0x3] %v361
      %v364 = vld [vmem:[#allocation3] sm:$0xf]
      %365 = vrot.lane.b32.xlu0 %v295, 127
      %v366 = vpop.permute.xlu0 %365
      %v367 = vrot.slane %v366, 6
      %vm368 = vcmask 1039360
      %v369 = vsel %vm368, %v367, %v366
      %vm370 = vcmp.ne.s16.totalorder %v369, 0
      %v371 = vsel %vm370, %v364, 0
      %v373 = vcombine.low %v371, %v371
      %v375 = vunpack.c.l.s4 1983009808
      %v376 = vunpack.c.0.s8 %v375
      %v377 = vlaneseq
      %v378 = vshrl.u32 %v377, 7
      %v379 = vsub.s32 %v376, %v378
      %v380 = vrot.slane %v373, %v379
      %381 = vrot.lane.b32.xlu0 %v380, 1
      %v382 = vpop.permute.xlu0 %381
      %v383 = vrot.slane %v382, 4
      %vm384 = vcmask 7168
      %v385 = vsel %vm384, %v382, %v383
      %387 = vst [vmem:[#allocation4 + $0x4] sm:$0xc] %v385
      %v388 = vld [vmem:[#allocation3 + $0x2] sm:$0x3]
      %389 = vst [vmem:[#allocation4 + $0x8] sm:$0x3] %v388
      %v390 = vld [vmem:[#allocation3 + $0x2] sm:$0xf]
      %391 = vrot.lane.b32.xlu0 %v341, 1
      %v392 = vpop.permute.xlu0 %391
      %v393 = vrot.slane %v392, 6
      %v394 = vsel %vm384, %v393, %v392
      %vm395 = vcmp.ne.s16.totalorder %v394, 0
      %v396 = vsel %vm395, %v390, 0
      %v398 = vcombine.low %v396, %v396
      %v400 = vunpack.c.l.s4 1983009808
      %v401 = vunpack.c.0.s8 %v400
      %v402 = vlaneseq
      %v403 = vshrl.u32 %v402, 7
      %v404 = vsub.s32 %v401, %v403
      %v405 = vrot.slane %v398, %v404
      %406 = vrot.lane.b32.xlu0 %v405, 127
      %v407 = vpop.permute.xlu0 %406
      %v408 = vrot.slane %v407, 4
      %v409 = vsel %vm368, %v407, %v408
      %411 = vst [vmem:[#allocation4 + $0x8] sm:$0xc] %v409
      %v412 = vld [vmem:[#allocation3 + $0x2] sm:$0xf]
      %413 = vrot.lane.b32.xlu0 %v295, 15
      %v414 = vpop.permute.xlu0 %413
      %v415 = vrot.slane %v414, 6
      %v416 = vsel %vm360, %v415, %v414
      %vm417 = vcmp.ne.s16.totalorder %v416, 0
      %v418 = vsel %vm417, %v412, 0
      %v421 = vunpack.c.l.s4 1983009808
      %v422 = vunpack.c.0.s8 %v421
      %v423 = vlaneseq
      %v424 = vshrl.u32 %v423, 7
      %v425 = vsub.s32 %v422, %v424
      %v426 = vrot.slane %v418, %v425
      %427 = vrot.lane.b32.xlu0 %v426, 113
      %v428 = vpop.permute.xlu0 %427
      %v429 = vrot.slane %v428, 4
      %v430 = vsel %vm345, %v428, %v429
      %432 = vst [vmem:[#allocation4 + $0xc] sm:$0x3] %v430
      %v433 = vld [vmem:[#allocation3 + $0x2] sm:$0xf]
      %v435 = vcombine.low %v433, %v433
      %v437 = vunpack.c.l.s4 1983009808
      %v438 = vunpack.c.0.s8 %v437
      %v439 = vlaneseq
      %v440 = vshrl.u32 %v439, 7
      %v441 = vsub.s32 %v438, %v440
      %v442 = vrot.slane %v435, %v441
      %443 = vrot.lane.b32.xlu0 %v442, 112
      %v444 = vpop.permute.xlu0 %443
      %v445 = vrot.slane %v444, 4
      %vm446 = vcmask 916480
      %v447 = vsel %vm446, %v444, %v445
      %449 = vst [vmem:[#allocation4 + $0xc] sm:$0xc] %v447
      %v450 = vld [vmem:[#allocation3 + $0x2] sm:$0xf]
      %451 = vrot.lane.b32.xlu0 %v341, 17
      %v452 = vpop.permute.xlu0 %451
      %v453 = vrot.slane %v452, 6
      %v454 = vsel %vm314, %v453, %v452
      %vm455 = vcmp.ne.s16.totalorder %v454, 0
      %v456 = vsel %vm455, %v450, 0
      %v459 = vunpack.c.l.s4 1983009808
      %v460 = vunpack.c.0.s8 %v459
      %v461 = vlaneseq
      %v462 = vshrl.u32 %v461, 7
      %v463 = vsub.s32 %v460, %v462
      %v464 = vrot.slane %v456, %v463
      %465 = vrot.lane.b32.xlu0 %v464, 111
      %v466 = vpop.permute.xlu0 %465
      %v467 = vrot.slane %v466, 4
      %v468 = vsel %vm299, %v466, %v467
      %470 = vst [vmem:[#allocation4 + $0x10] sm:$0x3] %v468
      %v471 = vld [vmem:[%s1] sm:$0xf]
      %v472 = vld [vmem:[#allocation4] sm:$0xf]
      %v473 = vld [vmem:[#allocation4 + $0x4] sm:$0xf]
      %v474 = vld [vmem:[#allocation4 + $0x8] sm:$0xf]
      %v475 = vld [vmem:[#allocation4 + $0xc] sm:$0xf]
      %v476 = vld [vmem:[#allocation4 + $0x10] sm:$0x3]
      %v482 = vunpack.c.l.b16 %v472
      %v483 = vunpack.c.l.b16 %v473
      %v484 = vunpack.c.l.b16 %v474
      %v485 = vunpack.c.l.b16 %v475
      %v486 = vunpack.c.l.b16 %v476
      %v487 = vpack.c.b16 %v483, %v482
      %v488 = vpack.c.b16 %v485, %v484
      %v489 = vpack.c.b16 %v486, %v486
      %vm492 = vcmask 293888
      %v494 = vsel %vm492, %v471, 0
      %vm496 = vcmask 1041408
      %v498 = vsel %vm496, %v489, 0
      %500 = vmatprep.subr.bf16.mxu0 0
      %501 = vmatpush1.bf16.msra.mxu0 0
      %502 = vmatprep.subr.bf16.mxu0 0
      %503 = vmatpush1.bf16.msra.mxu0 0
      %504 = vmatprep.subr.bf16.mxu0 0
      %505 = vmatpush1.bf16.msra.mxu0 0
      %506 = vmatprep.subr.bf16.mxu0 0
      %507 = vmatpush1.bf16.msra.mxu0 0
      %508 = vmatprep.subr.bf16.mxu0 0
      %509 = vmatpush1.bf16.msra.mxu0 0
      %510 = vmatprep.subr.bf16.mxu0 0
      %511 = vmatpush1.bf16.msra.mxu0 %v498
      %512 = vmatprep.subr.bf16.mxu0 0
      %513 = vmatpush1.bf16.msra.mxu0 %v488
      %514 = vmatprep.subr.bf16.mxu0 0
      %515 = vmatpush1.bf16.msra.mxu0 %v487
      %516 = vmatprep.subr.bf16.mxu0 0
      %517 = vmatpush2.bf16.msra.mxu0 0
      %518 = vmatprep.subr.bf16.mxu0 0
      %519 = vmatpush2.bf16.msra.mxu0 0
      %520 = vmatprep.subr.bf16.mxu0 0
      %521 = vmatpush2.bf16.msra.mxu0 0
      %522 = vmatprep.subr.bf16.mxu0 0
      %523 = vmatpush2.bf16.msra.mxu0 0
      %524 = vmatprep.subr.bf16.mxu0 0
      %525 = vmatpush2.bf16.msra.mxu0 0
      %526 = vmatprep.subr.bf16.mxu0 0
      %527 = vmatpush2.bf16.msra.mxu0 0
      %528 = vmatprep.subr.bf16.mxu0 0
      %529 = vmatpush2.bf16.msra.mxu0 0
      %530 = vmatprep.subr.bf16.mxu0 0
      %531 = vmatpush2.bf16.msra.mxu0 0
      %532 = vmatprep.mubr.bf16.mxu0 0
      %533 = vmatmul.mubr.bf16.gmra.mxu0 %v494
      %v534 = vpop.f32.mrf.mxu0
      %v535 = vadd.f32 0.0, %v534
      %v536 = vpop.f32.mrf.mxu0
      %v537 = vpop.f32.mrf.mxu0
      %v538 = vpop.f32.mrf.mxu0
      %539 = vdwg.mxu0
      %v540 = vpack.c.bf16 %v535, %v535
      %541 = vst [vmem:[%s230] sm:$0xf] %v540
      %542 = vadd.xlane.f32.xlu0 %v535
      %v543 = vpop.xlane.xlu0 %542
      %v544 = vmul.f32 %v543, 0.0078125
      %v545 = vsub.f32 %v535, %v544
      %v546 = vmul.f32 %v545, %v545
      %547 = vadd.xlane.f32.xlu0 %v546
      %v548 = vpop.xlane.xlu0 %547
      %vm549 = vcmask 7168
      %v550 = vsel %vm549, %v543, %v548
      %vm551 = vcmask 15360
      %552 = vst.msk [vmem:[%s238] sm:$0xff] %vm551, %v550
      %p553 = scmp.lt.s32.totalorder %s20, 1
      %s554 = scalar_select %p553, %s20, 1
      %p555 = scmp.lt.s32.totalorder %s21, 1
      %s556 = scalar_select %p555, %s21, 1
      %s557 = smul.addr %s554, 2
      %s558 = sadd.s32 %s556, %s557
      %s559 = smul.addr %s558, 4
      %s560 = scalar_lea.vmem %s3, %s559
      %p561 = scmp.lt.s32.totalorder %s20, 1
      %s562 = scalar_select %p561, %s20, 1
      %p563 = scmp.lt.s32.totalorder %s21, 1
      %s564 = scalar_select %p563, %s21, 1
      %s565 = smul.addr %s562, 2
      %s566 = sadd.s32 %s564, %s565
      %s567 = smul.addr %s566, 8
      %s568 = scalar_lea.vmem %s4, %s567
      // Predicated region
      $region37: #{double_conv.3} parent=31 // pred_check
        %p569 = pneg %p116
      $region38: #{double_conv.3} parent=31 // pred_check_branch
        %571 = sbr.rel (%p569) target = $region40
      $region39: #{double_conv.3} parent=31 // pred_region
        _
      $region40: #{double_conv.3} parent=31 // pred_fallthru
        _
      // Predicated region
      $region41: #{double_conv.3} parent=31 // pred_check
        %p572 = pneg %p144
      $region42: #{double_conv.3} parent=31 // pred_check_branch
        %574 = sbr.rel (%p572) target = $region44
      $region43: #{double_conv.3} parent=31 // pred_region
        _
      $region44: #{double_conv.3} parent=31 // pred_fallthru
        _
    $region32: #{double_conv.3} parent=5 // pred_fallthru
      _
    %p575 = scmp.le.s32.totalorder 2, %s11
    // Predicated region
    $region45: #{double_conv.3} parent=5 // pred_check
      %p576 = pneg %p575
    $region46: #{double_conv.3} parent=5 // pred_check_branch
      %578 = sbr.rel (%p576) target = $region48
    $region47: #{double_conv.3} parent=5 // pred_region
      %s579 = ssub.s32 %s11, 2
      // Predicated region
      $region49: #{double_conv.3} parent=47 // pred_check
        %p580 = pneg %p122
      $region50: #{double_conv.3} parent=47 // pred_check_branch
        %582 = sbr.rel (%p580) target = $region52
      $region51: #{double_conv.3} parent=47 // pred_region
        %p583 = scmp.lt.s32.totalorder %s22, 1
        %s584 = scalar_select %p583, %s22, 1
        %p585 = scmp.lt.s32.totalorder %s23, 1
        %s586 = scalar_select %p585, %s23, 1
        %s587 = smul.addr %s584, 2
        %s588 = sadd.s32 %s586, %s587
        %s589 = smul.addr %s588, 4
        %s590 = scalar_lea.vmem %s3, %s589
      $region52: #{double_conv.3} parent=47 // pred_fallthru
        _
      // Predicated region
      $region53: #{double_conv.3} parent=47 // pred_check
        %p591 = pneg %p150
      $region54: #{double_conv.3} parent=47 // pred_check_branch
        %593 = sbr.rel (%p591) target = $region56
      $region55: #{double_conv.3} parent=47 // pred_region
        %p594 = scmp.lt.s32.totalorder %s22, 1
        %s595 = scalar_select %p594, %s22, 1
        %p596 = scmp.lt.s32.totalorder %s23, 1
        %s597 = scalar_select %p596, %s23, 1
        %s598 = smul.addr %s595, 2
        %s599 = sadd.s32 %s597, %s598
        %s600 = smul.addr %s599, 8
        %s601 = scalar_lea.vmem %s4, %s600
      $region56: #{double_conv.3} parent=47 // pred_fallthru
        _
    $region48: #{double_conv.3} parent=5 // pred_fallthru
      _
  $region6: #{double_conv.3} parent=0 // loop_footer
    %s15 = sadd.s32 1, %s11
  $region7: #{double_conv.3} parent=0 // loop_footer_branch
    %10 = sbr.rel target = $region3
  $region8: #{double_conv.3} parent=0 // loop_exit
    _

</llo_original>
